<compile_context>
chip_gen: v7x
topology: tpu7x:2x2x1
jax: 0.10.0
libtpu: 0.0.40
codegen_flags: <defaults>
</compile_context>

<pallas_src>
import functools

import jax
import jax.numpy as jnp
from jax.experimental import pallas as pl
from jax.experimental.pallas import tpu as pltpu


# ---------------------------------------------------------------------------
# Fused Pallas kernel (LSTM layers + FC)
# ---------------------------------------------------------------------------
def make_fused_lstm_kernel(seq_len, batch, n_hidden, n_layers):
    S, B, H, L = seq_len, batch, n_hidden, n_layers

    def kernel(*refs):
        n_in = 1 + 3 * L + 4
        x_ref = refs[0]                                  # (S*B, V) bf16, time-major
        layer_refs = refs[1:1 + 3 * L]                   # per layer: w_ih, w_hh, b
        h0_ref, c0_ref, fcw_ref, fcb_ref = refs[1 + 3 * L:n_in]
        logits_ref, hN_ref, cN_ref = refs[n_in:n_in + 3]
        (y_sc,) = refs[n_in + 3:]                        # (S*B, H) bf16 scratch

        wih = [layer_refs[3 * l] for l in range(L)]
        whh = [layer_refs[3 * l + 1] for l in range(L)]
        bias = [layer_refs[3 * l + 2] for l in range(L)]

        # ---- hoisted layer-0 input projection: one MXU matmul, off the chain
        gx0 = (jnp.dot(x_ref[...], wih[0][...],
                       preferred_element_type=jnp.float32) + bias[0][...])

        h = [h0_ref[l] for l in range(L)]                # (B, H) f32 carried state
        c = [c0_ref[l] for l in range(L)]

        # ---- wavefront recurrence: at step w, layer l handles t = w - l, so
        # every body reads only the state carried in from step w-1 and the L
        # per-step chains are independent (latencies hide behind each other).
        for w in range(S + L - 1):
            h_prev = list(h)                             # carried-in (pre-update) h
            for l in range(L):
                t = w - l
                if t < 0 or t >= S:
                    continue
                if l == 0:
                    gates = (gx0[t * B:(t + 1) * B, :]
                             + jnp.dot(h_prev[0].astype(jnp.bfloat16), whh[0][...],
                                       preferred_element_type=jnp.float32))
                else:
                    gates = (jnp.dot(h_prev[l - 1].astype(jnp.bfloat16), wih[l][...],
                                     preferred_element_type=jnp.float32)
                             + jnp.dot(h_prev[l].astype(jnp.bfloat16), whh[l][...],
                                       preferred_element_type=jnp.float32)
                             + bias[l][...])
                # single EUP pass: i/f/o columns were pre-scaled by 0.5, so
                # sigmoid(z) == 0.5 * tanh(z/2) + 0.5 falls out of one tanh.
                tg = jnp.tanh(gates)                     # (B, 4H) f32
                i_g = 0.5 * tg[:, 0 * H:1 * H] + 0.5
                f_g = 0.5 * tg[:, 1 * H:2 * H] + 0.5
                g_g = tg[:, 2 * H:3 * H]
                o_g = 0.5 * tg[:, 3 * H:4 * H] + 0.5
                c_new = f_g * c[l] + i_g * g_g
                h_new = o_g * jnp.tanh(c_new)
                c[l] = c_new
                h[l] = h_new
                if l == L - 1:                           # last layer feeds the FC
                    y_sc[t * B:(t + 1) * B, :] = h_new.astype(jnp.bfloat16)

        for l in range(L):
            hN_ref[l] = h[l]
            cN_ref[l] = c[l]

        # ---- fused FC over the whole (S*B, H) slab: one matmul, one
        # lane-dense store (output columns padded to 128 in the wrapper).
        # TODO(synk): nn.Dropout(p=0.5) before the FC is identity in eval mode;
        # training-mode dropout (random mask + 1/(1-p) scaling) is not applied.
        logits_ref[...] = (jnp.dot(y_sc[...], fcw_ref[...],
                                   preferred_element_type=jnp.float32)
                           + fcb_ref[...]).astype(logits_ref.dtype)

    return kernel


# ---------------------------------------------------------------------------
# Wrapper (mirrors LSTM.forward)
# ---------------------------------------------------------------------------
@functools.partial(jax.jit, static_argnames=("n_layers", "n_hidden"))
def lstm_forward(x, h0, c0, params, *, n_layers, n_hidden):
    """x: (B, S, V) batch_first, h0/c0: (L, B, H).
    Returns (logits (B*S, V), (hN (L, B, H), cN (L, B, H)))."""
    B, S, V = x.shape
    H = n_hidden
    Vp = ((V + 127) // 128) * 128            # lane-dense logits columns

    # time-major (S*B, V): every timestep is a contiguous row block; bf16 MXU input
    x2d = jnp.transpose(x, (1, 0, 2)).reshape(S * B, V).astype(jnp.bfloat16)

    # sigmoid-via-tanh pre-scale: fold 0.5 into the i/f/o gate columns of
    # W_ih, W_hh and b (exact in bf16: power-of-two scale); g gate keeps 1.0.
    gate_scale = jnp.concatenate([jnp.full((H,), 0.5, jnp.float32),
                                  jnp.full((H,), 0.5, jnp.float32),
                                  jnp.ones((H,), jnp.float32),
                                  jnp.full((H,), 0.5, jnp.float32)])

    inputs = [x2d]
    for layer in range(n_layers):
        w_ih_T, w_hh_T, b = params["lstm"][layer]
        inputs += [(w_ih_T.astype(jnp.float32) * gate_scale).astype(jnp.bfloat16),
                   (w_hh_T.astype(jnp.float32) * gate_scale).astype(jnp.bfloat16),
                   b * gate_scale]
    fc_w_p = jnp.pad(params["fc_w_T"].astype(jnp.float32),
                     ((0, 0), (0, Vp - V))).astype(jnp.bfloat16)
    fc_b_p = jnp.pad(params["fc_b"], (0, Vp - V)).reshape(1, Vp)
    inputs += [h0, c0, fc_w_p, fc_b_p]

    kernel = make_fused_lstm_kernel(S, B, H, n_layers)
    vmem = pl.BlockSpec(memory_space=pltpu.MemorySpace.VMEM)
    logits_tm, hN, cN = pl.pallas_call(
        kernel,
        out_shape=(jax.ShapeDtypeStruct((S * B, Vp), jnp.float32),
                   jax.ShapeDtypeStruct((n_layers, B, H), jnp.float32),
                   jax.ShapeDtypeStruct((n_layers, B, H), jnp.float32)),
        in_specs=[vmem] * len(inputs),
        out_specs=(vmem, vmem, vmem),
        scratch_shapes=[pltpu.VMEM((S * B, H), jnp.bfloat16)],   # last-layer y
    )(*inputs)

    # batch_first row order (b*S + t), matching x.reshape(B*S, n_hidden) @ fc
    logits = jnp.transpose(logits_tm.reshape(S, B, Vp), (1, 0, 2)).reshape(B * S, Vp)
    return logits[:, :V], (hN, cN)


# ---------------------------------------------------------------------------
# Pure-JAX reference (standard sigmoid, same bf16-weight / f32-accum math)
# ---------------------------------------------------------------------------
def lstm_forward_ref(x, h0, c0, params, n_layers, n_hidden):
    B, S, _ = x.shape
    H = n_hidden
    layer_in = jnp.transpose(x, (1, 0, 2))            # (S, B, V) time-major
    h_finals, c_finals = [], []
    for layer in range(n_layers):
        w_ih_T, w_hh_T, b = params["lstm"][layer]

        def step(carry, x_t):
            h, c = carry
            g = (jnp.dot(x_t.astype(jnp.bfloat16), w_ih_T,
                         preferred_element_type=jnp.float32)
                 + jnp.dot(h.astype(jnp.bfloat16), w_hh_T,
                           preferred_element_type=jnp.float32)
                 + b[0])
            i = jax.nn.sigmoid(g[:, :H])
            f = jax.nn.sigmoid(g[:, H:2 * H])
            gg = jnp.tanh(g[:, 2 * H:3 * H])
            o = jax.nn.sigmoid(g[:, 3 * H:])
            c = f * c + i * gg
            h = o * jnp.tanh(c)
            return (h, c), h

        (hN, cN), ys = jax.lax.scan(step, (h0[layer], c0[layer]), layer_in)
        h_finals.append(hN)
        c_finals.append(cN)
        layer_in = ys
    y_flat = jnp.transpose(layer_in, (1, 0, 2)).reshape(B * S, H)
    logits = (jnp.dot(y_flat.astype(jnp.bfloat16), params["fc_w_T"],
                      preferred_element_type=jnp.float32) + params["fc_b"])
    return logits, (jnp.stack(h_finals), jnp.stack(c_finals))


# ---------------------------------------------------------------------------
# Main
# ---------------------------------------------------------------------------
if __name__ == "__main__":
    VOCAB = 16       # len(tokens)
    N_HIDDEN = 32
    N_LAYERS = 2
    BATCH = 2
    SEQ = 8

    key = jax.random.PRNGKey(0)
    keys = jax.random.split(key, 16)

    # PyTorch-like parameter init, pre-transposed; matmul weights stored in bf16
    lstm_params = []
    kidx = 0
    for layer in range(N_LAYERS):
        in_size = VOCAB if layer == 0 else N_HIDDEN
        bound = 1.0 / jnp.sqrt(N_HIDDEN)
        w_ih = jax.random.uniform(keys[kidx], (4 * N_HIDDEN, in_size),
                                  minval=-bound, maxval=bound); kidx += 1
        w_hh = jax.random.uniform(keys[kidx], (4 * N_HIDDEN, N_HIDDEN),
                                  minval=-bound, maxval=bound); kidx += 1
        b_ih = jax.random.uniform(keys[kidx], (4 * N_HIDDEN,),
                                  minval=-bound, maxval=bound); kidx += 1
        b_hh = jax.random.uniform(keys[kidx], (4 * N_HIDDEN,),
                                  minval=-bound, maxval=bound); kidx += 1
        lstm_params.append((jnp.asarray(w_ih.T, jnp.bfloat16),
                            jnp.asarray(w_hh.T, jnp.bfloat16),
                            jnp.asarray((b_ih + b_hh).reshape(1, -1), jnp.float32)))

    # fc: weight ~ U(-1, 1), bias = 0 (matches init_weights)
    fc_w = jax.random.uniform(keys[kidx], (VOCAB, N_HIDDEN),
                              minval=-1.0, maxval=1.0); kidx += 1
    params = {
        "lstm": lstm_params,
        "fc_w_T": jnp.asarray(fc_w.T, jnp.bfloat16),
        "fc_b": jnp.zeros((VOCAB,), jnp.float32),
    }

    # Inputs: batch_first sequence + zero hidden state (init_hidden)
    x = jax.random.uniform(keys[kidx], (BATCH, SEQ, VOCAB), dtype=jnp.float32)
    h0 = jnp.zeros((N_LAYERS, BATCH, N_HIDDEN), jnp.float32)
    c0 = jnp.zeros((N_LAYERS, BATCH, N_HIDDEN), jnp.float32)

    logits, (hN, cN) = lstm_forward(x, h0, c0, params,
                                    n_layers=N_LAYERS, n_hidden=N_HIDDEN)
    jax.block_until_ready((logits, hN, cN))

    # Verify against pure-JAX reference
    ref_logits, (ref_h, ref_c) = lstm_forward_ref(x, h0, c0, params,
                                                  N_LAYERS, N_HIDDEN)
    assert logits.shape == (BATCH * SEQ, VOCAB)
    assert hN.shape == (N_LAYERS, BATCH, N_HIDDEN)
    assert cN.shape == (N_LAYERS, BATCH, N_HIDDEN)
    assert jnp.allclose(logits, ref_logits, atol=5e-3, rtol=5e-3)
    assert jnp.allclose(hN, ref_h, atol=5e-3, rtol=5e-3)
    assert jnp.allclose(cN, ref_c, atol=5e-3, rtol=5e-3)

    print("KERNEL_OK")
</pallas_src>

<mosaic_0001>
module attributes {stable_mosaic.version = 11 : i64} {
  func.func @kernel(%arg0: memref<16x16xbf16, #tpu.memory_space<vmem>>, %arg1: memref<16x128xbf16, #tpu.memory_space<vmem>>, %arg2: memref<32x128xbf16, #tpu.memory_space<vmem>>, %arg3: memref<1x128xf32, #tpu.memory_space<vmem>>, %arg4: memref<32x128xbf16, #tpu.memory_space<vmem>>, %arg5: memref<32x128xbf16, #tpu.memory_space<vmem>>, %arg6: memref<1x128xf32, #tpu.memory_space<vmem>>, %arg7: memref<2x2x32xf32, #tpu.memory_space<vmem>>, %arg8: memref<2x2x32xf32, #tpu.memory_space<vmem>>, %arg9: memref<32x128xbf16, #tpu.memory_space<vmem>>, %arg10: memref<1x128xf32, #tpu.memory_space<vmem>>, %arg11: memref<16x128xf32, #tpu.memory_space<vmem>>, %arg12: memref<2x2x32xf32, #tpu.memory_space<vmem>>, %arg13: memref<2x2x32xf32, #tpu.memory_space<vmem>>, %arg14: memref<16x32xbf16, #tpu.memory_space<vmem>>) attributes {dimension_semantics = [], scalar_prefetch = 0 : i64, scratch_operands = 1 : i64, tpu.core_type = #tpu.core_type<tc>} {
    %c0 = arith.constant 0 : index
    %c0_0 = arith.constant 0 : index
    %0 = vector.load %arg0[%c0, %c0_0] : memref<16x16xbf16, #tpu.memory_space<vmem>>, vector<16x16xbf16>
    %c0_1 = arith.constant 0 : index
    %c0_2 = arith.constant 0 : index
    %1 = vector.load %arg1[%c0_1, %c0_2] : memref<16x128xbf16, #tpu.memory_space<vmem>>, vector<16x128xbf16>
    %cst = arith.constant dense<0.000000e+00> : vector<16x128xf32>
    %2 = tpu.matmul %0, %1, %cst {dimension_numbers = #tpu.dot_dimension_numbers<[1], [0], [0], [1], [0, 0, 1, 1], [], []>} : vector<16x16xbf16>, vector<16x128xbf16>, vector<16x128xf32> -> vector<16x128xf32>
    %c0_3 = arith.constant 0 : index
    %c0_4 = arith.constant 0 : index
    %3 = vector.load %arg3[%c0_3, %c0_4] : memref<1x128xf32, #tpu.memory_space<vmem>>, vector<1x128xf32>
    %4 = vector.broadcast %3 : vector<1x128xf32> to vector<16x128xf32>
    %5 = arith.addf %2, %4 : vector<16x128xf32>
    %c0_5 = arith.constant 0 : index
    %c0_6 = arith.constant 0 : index
    %c0_7 = arith.constant 0 : index
    %6 = vector.load %arg7[%c0_5, %c0_6, %c0_7] : memref<2x2x32xf32, #tpu.memory_space<vmem>>, vector<1x2x32xf32>
    %7 = vector.shape_cast %6 : vector<1x2x32xf32> to vector<2x32xf32>
    %c1 = arith.constant 1 : index
    %c0_8 = arith.constant 0 : index
    %c0_9 = arith.constant 0 : index
    %8 = vector.load %arg7[%c1, %c0_8, %c0_9] : memref<2x2x32xf32, #tpu.memory_space<vmem>>, vector<1x2x32xf32>
    %9 = vector.shape_cast %8 : vector<1x2x32xf32> to vector<2x32xf32>
    %c0_10 = arith.constant 0 : index
    %c0_11 = arith.constant 0 : index
    %c0_12 = arith.constant 0 : index
    %10 = vector.load %arg8[%c0_10, %c0_11, %c0_12] : memref<2x2x32xf32, #tpu.memory_space<vmem>>, vector<1x2x32xf32>
    %11 = vector.shape_cast %10 : vector<1x2x32xf32> to vector<2x32xf32>
    %c1_13 = arith.constant 1 : index
    %c0_14 = arith.constant 0 : index
    %c0_15 = arith.constant 0 : index
    %12 = vector.load %arg8[%c1_13, %c0_14, %c0_15] : memref<2x2x32xf32, #tpu.memory_space<vmem>>, vector<1x2x32xf32>
    %13 = vector.shape_cast %12 : vector<1x2x32xf32> to vector<2x32xf32>
    %14 = vector.extract_strided_slice %5 {offsets = [0, 0], sizes = [2, 128], strides = [1, 1]} : vector<16x128xf32> to vector<2x128xf32>
    %15 = arith.truncf %7 : vector<2x32xf32> to vector<2x32xbf16>
    %c0_16 = arith.constant 0 : index
    %c0_17 = arith.constant 0 : index
    %16 = vector.load %arg2[%c0_16, %c0_17] : memref<32x128xbf16, #tpu.memory_space<vmem>>, vector<32x128xbf16>
    %cst_18 = arith.constant dense<0.000000e+00> : vector<2x128xf32>
    %17 = tpu.matmul %15, %16, %cst_18 {dimension_numbers = #tpu.dot_dimension_numbers<[1], [0], [0], [1], [0, 0, 1, 1], [], []>} : vector<2x32xbf16>, vector<32x128xbf16>, vector<2x128xf32> -> vector<2x128xf32>
    %18 = arith.addf %14, %17 : vector<2x128xf32>
    %19 = math.tanh %18 : vector<2x128xf32>
    %20 = vector.extract_strided_slice %19 {offsets = [0, 0], sizes = [2, 32], strides = [1, 1]} : vector<2x128xf32> to vector<2x32xf32>
    %cst_19 = arith.constant 5.000000e-01 : f32
    %21 = vector.broadcast %cst_19 : f32 to vector<2x32xf32>
    %22 = arith.mulf %21, %20 : vector<2x32xf32>
    %cst_20 = arith.constant 5.000000e-01 : f32
    %23 = vector.broadcast %cst_20 : f32 to vector<2x32xf32>
    %24 = arith.addf %22, %23 : vector<2x32xf32>
    %25 = vector.extract_strided_slice %19 {offsets = [0, 32], sizes = [2, 32], strides = [1, 1]} : vector<2x128xf32> to vector<2x32xf32>
    %cst_21 = arith.constant 5.000000e-01 : f32
    %26 = vector.broadcast %cst_21 : f32 to vector<2x32xf32>
    %27 = arith.mulf %26, %25 : vector<2x32xf32>
    %cst_22 = arith.constant 5.000000e-01 : f32
    %28 = vector.broadcast %cst_22 : f32 to vector<2x32xf32>
    %29 = arith.addf %27, %28 : vector<2x32xf32>
    %30 = vector.extract_strided_slice %19 {offsets = [0, 64], sizes = [2, 32], strides = [1, 1]} : vector<2x128xf32> to vector<2x32xf32>
    %31 = vector.extract_strided_slice %19 {offsets = [0, 96], sizes = [2, 32], strides = [1, 1]} : vector<2x128xf32> to vector<2x32xf32>
    %cst_23 = arith.constant 5.000000e-01 : f32
    %32 = vector.broadcast %cst_23 : f32 to vector<2x32xf32>
    %33 = arith.mulf %32, %31 : vector<2x32xf32>
    %cst_24 = arith.constant 5.000000e-01 : f32
    %34 = vector.broadcast %cst_24 : f32 to vector<2x32xf32>
    %35 = arith.addf %33, %34 : vector<2x32xf32>
    %36 = arith.mulf %29, %11 : vector<2x32xf32>
    %37 = arith.mulf %24, %30 : vector<2x32xf32>
    %38 = arith.addf %36, %37 : vector<2x32xf32>
    %39 = math.tanh %38 : vector<2x32xf32>
    %40 = arith.mulf %35, %39 : vector<2x32xf32>
    %41 = vector.extract_strided_slice %5 {offsets = [2, 0], sizes = [2, 128], strides = [1, 1]} : vector<16x128xf32> to vector<2x128xf32>
    %42 = arith.truncf %40 : vector<2x32xf32> to vector<2x32xbf16>
    %c0_25 = arith.constant 0 : index
    %c0_26 = arith.constant 0 : index
    %43 = vector.load %arg2[%c0_25, %c0_26] : memref<32x128xbf16, #tpu.memory_space<vmem>>, vector<32x128xbf16>
    %cst_27 = arith.constant dense<0.000000e+00> : vector<2x128xf32>
    %44 = tpu.matmul %42, %43, %cst_27 {dimension_numbers = #tpu.dot_dimension_numbers<[1], [0], [0], [1], [0, 0, 1, 1], [], []>} : vector<2x32xbf16>, vector<32x128xbf16>, vector<2x128xf32> -> vector<2x128xf32>
    %45 = arith.addf %41, %44 : vector<2x128xf32>
    %46 = math.tanh %45 : vector<2x128xf32>
    %47 = vector.extract_strided_slice %46 {offsets = [0, 0], sizes = [2, 32], strides = [1, 1]} : vector<2x128xf32> to vector<2x32xf32>
    %cst_28 = arith.constant 5.000000e-01 : f32
    %48 = vector.broadcast %cst_28 : f32 to vector<2x32xf32>
    %49 = arith.mulf %48, %47 : vector<2x32xf32>
    %cst_29 = arith.constant 5.000000e-01 : f32
    %50 = vector.broadcast %cst_29 : f32 to vector<2x32xf32>
    %51 = arith.addf %49, %50 : vector<2x32xf32>
    %52 = vector.extract_strided_slice %46 {offsets = [0, 32], sizes = [2, 32], strides = [1, 1]} : vector<2x128xf32> to vector<2x32xf32>
    %cst_30 = arith.constant 5.000000e-01 : f32
    %53 = vector.broadcast %cst_30 : f32 to vector<2x32xf32>
    %54 = arith.mulf %53, %52 : vector<2x32xf32>
    %cst_31 = arith.constant 5.000000e-01 : f32
    %55 = vector.broadcast %cst_31 : f32 to vector<2x32xf32>
    %56 = arith.addf %54, %55 : vector<2x32xf32>
    %57 = vector.extract_strided_slice %46 {offsets = [0, 64], sizes = [2, 32], strides = [1, 1]} : vector<2x128xf32> to vector<2x32xf32>
    %58 = vector.extract_strided_slice %46 {offsets = [0, 96], sizes = [2, 32], strides = [1, 1]} : vector<2x128xf32> to vector<2x32xf32>
    %cst_32 = arith.constant 5.000000e-01 : f32
    %59 = vector.broadcast %cst_32 : f32 to vector<2x32xf32>
    %60 = arith.mulf %59, %58 : vector<2x32xf32>
    %cst_33 = arith.constant 5.000000e-01 : f32
    %61 = vector.broadcast %cst_33 : f32 to vector<2x32xf32>
    %62 = arith.addf %60, %61 : vector<2x32xf32>
    %63 = arith.mulf %56, %38 : vector<2x32xf32>
    %64 = arith.mulf %51, %57 : vector<2x32xf32>
    %65 = arith.addf %63, %64 : vector<2x32xf32>
    %66 = math.tanh %65 : vector<2x32xf32>
    %67 = arith.mulf %62, %66 : vector<2x32xf32>
    %68 = arith.truncf %40 : vector<2x32xf32> to vector<2x32xbf16>
    %c0_34 = arith.constant 0 : index
    %c0_35 = arith.constant 0 : index
    %69 = vector.load %arg4[%c0_34, %c0_35] : memref<32x128xbf16, #tpu.memory_space<vmem>>, vector<32x128xbf16>
    %cst_36 = arith.constant dense<0.000000e+00> : vector<2x128xf32>
    %70 = tpu.matmul %68, %69, %cst_36 {dimension_numbers = #tpu.dot_dimension_numbers<[1], [0], [0], [1], [0, 0, 1, 1], [], []>} : vector<2x32xbf16>, vector<32x128xbf16>, vector<2x128xf32> -> vector<2x128xf32>
    %71 = arith.truncf %9 : vector<2x32xf32> to vector<2x32xbf16>
    %c0_37 = arith.constant 0 : index
    %c0_38 = arith.constant 0 : index
    %72 = vector.load %arg5[%c0_37, %c0_38] : memref<32x128xbf16, #tpu.memory_space<vmem>>, vector<32x128xbf16>
    %cst_39 = arith.constant dense<0.000000e+00> : vector<2x128xf32>
    %73 = tpu.matmul %71, %72, %cst_39 {dimension_numbers = #tpu.dot_dimension_numbers<[1], [0], [0], [1], [0, 0, 1, 1], [], []>} : vector<2x32xbf16>, vector<32x128xbf16>, vector<2x128xf32> -> vector<2x128xf32>
    %74 = arith.addf %70, %73 : vector<2x128xf32>
    %c0_40 = arith.constant 0 : index
    %c0_41 = arith.constant 0 : index
    %75 = vector.load %arg6[%c0_40, %c0_41] : memref<1x128xf32, #tpu.memory_space<vmem>>, vector<1x128xf32>
    %76 = vector.broadcast %75 : vector<1x128xf32> to vector<2x128xf32>
    %77 = arith.addf %74, %76 : vector<2x128xf32>
    %78 = math.tanh %77 : vector<2x128xf32>
    %79 = vector.extract_strided_slice %78 {offsets = [0, 0], sizes = [2, 32], strides = [1, 1]} : vector<2x128xf32> to vector<2x32xf32>
    %cst_42 = arith.constant 5.000000e-01 : f32
    %80 = vector.broadcast %cst_42 : f32 to vector<2x32xf32>
    %81 = arith.mulf %80, %79 : vector<2x32xf32>
    %cst_43 = arith.constant 5.000000e-01 : f32
    %82 = vector.broadcast %cst_43 : f32 to vector<2x32xf32>
    %83 = arith.addf %81, %82 : vector<2x32xf32>
    %84 = vector.extract_strided_slice %78 {offsets = [0, 32], sizes = [2, 32], strides = [1, 1]} : vector<2x128xf32> to vector<2x32xf32>
    %cst_44 = arith.constant 5.000000e-01 : f32
    %85 = vector.broadcast %cst_44 : f32 to vector<2x32xf32>
    %86 = arith.mulf %85, %84 : vector<2x32xf32>
    %cst_45 = arith.constant 5.000000e-01 : f32
    %87 = vector.broadcast %cst_45 : f32 to vector<2x32xf32>
    %88 = arith.addf %86, %87 : vector<2x32xf32>
    %89 = vector.extract_strided_slice %78 {offsets = [0, 64], sizes = [2, 32], strides = [1, 1]} : vector<2x128xf32> to vector<2x32xf32>
    %90 = vector.extract_strided_slice %78 {offsets = [0, 96], sizes = [2, 32], strides = [1, 1]} : vector<2x128xf32> to vector<2x32xf32>
    %cst_46 = arith.constant 5.000000e-01 : f32
    %91 = vector.broadcast %cst_46 : f32 to vector<2x32xf32>
    %92 = arith.mulf %91, %90 : vector<2x32xf32>
    %cst_47 = arith.constant 5.000000e-01 : f32
    %93 = vector.broadcast %cst_47 : f32 to vector<2x32xf32>
    %94 = arith.addf %92, %93 : vector<2x32xf32>
    %95 = arith.mulf %88, %13 : vector<2x32xf32>
    %96 = arith.mulf %83, %89 : vector<2x32xf32>
    %97 = arith.addf %95, %96 : vector<2x32xf32>
    %98 = math.tanh %97 : vector<2x32xf32>
    %99 = arith.mulf %94, %98 : vector<2x32xf32>
    %100 = arith.truncf %99 : vector<2x32xf32> to vector<2x32xbf16>
    %c0_48 = arith.constant 0 : index
    %c0_49 = arith.constant 0 : index
    %101 = vector.load %arg14[%c0_48, %c0_49] : memref<16x32xbf16, #tpu.memory_space<vmem>>, vector<2x32xbf16>
    tpu.vector_store %arg14[%c0_48, %c0_49], %100 {strides = array<i32>} : memref<16x32xbf16, #tpu.memory_space<vmem>>, vector<2x32xbf16>,
    %102 = vector.extract_strided_slice %5 {offsets = [4, 0], sizes = [2, 128], strides = [1, 1]} : vector<16x128xf32> to vector<2x128xf32>
    %103 = arith.truncf %67 : vector<2x32xf32> to vector<2x32xbf16>
    %c0_50 = arith.constant 0 : index
    %c0_51 = arith.constant 0 : index
    %104 = vector.load %arg2[%c0_50, %c0_51] : memref<32x128xbf16, #tpu.memory_space<vmem>>, vector<32x128xbf16>
    %cst_52 = arith.constant dense<0.000000e+00> : vector<2x128xf32>
    %105 = tpu.matmul %103, %104, %cst_52 {dimension_numbers = #tpu.dot_dimension_numbers<[1], [0], [0], [1], [0, 0, 1, 1], [], []>} : vector<2x32xbf16>, vector<32x128xbf16>, vector<2x128xf32> -> vector<2x128xf32>
    %106 = arith.addf %102, %105 : vector<2x128xf32>
    %107 = math.tanh %106 : vector<2x128xf32>
    %108 = vector.extract_strided_slice %107 {offsets = [0, 0], sizes = [2, 32], strides = [1, 1]} : vector<2x128xf32> to vector<2x32xf32>
    %cst_53 = arith.constant 5.000000e-01 : f32
    %109 = vector.broadcast %cst_53 : f32 to vector<2x32xf32>
    %110 = arith.mulf %109, %108 : vector<2x32xf32>
    %cst_54 = arith.constant 5.000000e-01 : f32
    %111 = vector.broadcast %cst_54 : f32 to vector<2x32xf32>
    %112 = arith.addf %110, %111 : vector<2x32xf32>
    %113 = vector.extract_strided_slice %107 {offsets = [0, 32], sizes = [2, 32], strides = [1, 1]} : vector<2x128xf32> to vector<2x32xf32>
    %cst_55 = arith.constant 5.000000e-01 : f32
    %114 = vector.broadcast %cst_55 : f32 to vector<2x32xf32>
    %115 = arith.mulf %114, %113 : vector<2x32xf32>
    %cst_56 = arith.constant 5.000000e-01 : f32
    %116 = vector.broadcast %cst_56 : f32 to vector<2x32xf32>
    %117 = arith.addf %115, %116 : vector<2x32xf32>
    %118 = vector.extract_strided_slice %107 {offsets = [0, 64], sizes = [2, 32], strides = [1, 1]} : vector<2x128xf32> to vector<2x32xf32>
    %119 = vector.extract_strided_slice %107 {offsets = [0, 96], sizes = [2, 32], strides = [1, 1]} : vector<2x128xf32> to vector<2x32xf32>
    %cst_57 = arith.constant 5.000000e-01 : f32
    %120 = vector.broadcast %cst_57 : f32 to vector<2x32xf32>
    %121 = arith.mulf %120, %119 : vector<2x32xf32>
    %cst_58 = arith.constant 5.000000e-01 : f32
    %122 = vector.broadcast %cst_58 : f32 to vector<2x32xf32>
    %123 = arith.addf %121, %122 : vector<2x32xf32>
    %124 = arith.mulf %117, %65 : vector<2x32xf32>
    %125 = arith.mulf %112, %118 : vector<2x32xf32>
    %126 = arith.addf %124, %125 : vector<2x32xf32>
    %127 = math.tanh %126 : vector<2x32xf32>
    %128 = arith.mulf %123, %127 : vector<2x32xf32>
    %129 = arith.truncf %67 : vector<2x32xf32> to vector<2x32xbf16>
    %c0_59 = arith.constant 0 : index
    %c0_60 = arith.constant 0 : index
    %130 = vector.load %arg4[%c0_59, %c0_60] : memref<32x128xbf16, #tpu.memory_space<vmem>>, vector<32x128xbf16>
    %cst_61 = arith.constant dense<0.000000e+00> : vector<2x128xf32>
    %131 = tpu.matmul %129, %130, %cst_61 {dimension_numbers = #tpu.dot_dimension_numbers<[1], [0], [0], [1], [0, 0, 1, 1], [], []>} : vector<2x32xbf16>, vector<32x128xbf16>, vector<2x128xf32> -> vector<2x128xf32>
    %132 = arith.truncf %99 : vector<2x32xf32> to vector<2x32xbf16>
    %c0_62 = arith.constant 0 : index
    %c0_63 = arith.constant 0 : index
    %133 = vector.load %arg5[%c0_62, %c0_63] : memref<32x128xbf16, #tpu.memory_space<vmem>>, vector<32x128xbf16>
    %cst_64 = arith.constant dense<0.000000e+00> : vector<2x128xf32>
    %134 = tpu.matmul %132, %133, %cst_64 {dimension_numbers = #tpu.dot_dimension_numbers<[1], [0], [0], [1], [0, 0, 1, 1], [], []>} : vector<2x32xbf16>, vector<32x128xbf16>, vector<2x128xf32> -> vector<2x128xf32>
    %135 = arith.addf %131, %134 : vector<2x128xf32>
    %c0_65 = arith.constant 0 : index
    %c0_66 = arith.constant 0 : index
    %136 = vector.load %arg6[%c0_65, %c0_66] : memref<1x128xf32, #tpu.memory_space<vmem>>, vector<1x128xf32>
    %137 = vector.broadcast %136 : vector<1x128xf32> to vector<2x128xf32>
    %138 = arith.addf %135, %137 : vector<2x128xf32>
    %139 = math.tanh %138 : vector<2x128xf32>
    %140 = vector.extract_strided_slice %139 {offsets = [0, 0], sizes = [2, 32], strides = [1, 1]} : vector<2x128xf32> to vector<2x32xf32>
    %cst_67 = arith.constant 5.000000e-01 : f32
    %141 = vector.broadcast %cst_67 : f32 to vector<2x32xf32>
    %142 = arith.mulf %141, %140 : vector<2x32xf32>
    %cst_68 = arith.constant 5.000000e-01 : f32
    %143 = vector.broadcast %cst_68 : f32 to vector<2x32xf32>
    %144 = arith.addf %142, %143 : vector<2x32xf32>
    %145 = vector.extract_strided_slice %139 {offsets = [0, 32], sizes = [2, 32], strides = [1, 1]} : vector<2x128xf32> to vector<2x32xf32>
    %cst_69 = arith.constant 5.000000e-01 : f32
    %146 = vector.broadcast %cst_69 : f32 to vector<2x32xf32>
    %147 = arith.mulf %146, %145 : vector<2x32xf32>
    %cst_70 = arith.constant 5.000000e-01 : f32
    %148 = vector.broadcast %cst_70 : f32 to vector<2x32xf32>
    %149 = arith.addf %147, %148 : vector<2x32xf32>
    %150 = vector.extract_strided_slice %139 {offsets = [0, 64], sizes = [2, 32], strides = [1, 1]} : vector<2x128xf32> to vector<2x32xf32>
    %151 = vector.extract_strided_slice %139 {offsets = [0, 96], sizes = [2, 32], strides = [1, 1]} : vector<2x128xf32> to vector<2x32xf32>
    %cst_71 = arith.constant 5.000000e-01 : f32
    %152 = vector.broadcast %cst_71 : f32 to vector<2x32xf32>
    %153 = arith.mulf %152, %151 : vector<2x32xf32>
    %cst_72 = arith.constant 5.000000e-01 : f32
    %154 = vector.broadcast %cst_72 : f32 to vector<2x32xf32>
    %155 = arith.addf %153, %154 : vector<2x32xf32>
    %156 = arith.mulf %149, %97 : vector<2x32xf32>
    %157 = arith.mulf %144, %150 : vector<2x32xf32>
    %158 = arith.addf %156, %157 : vector<2x32xf32>
    %159 = math.tanh %158 : vector<2x32xf32>
    %160 = arith.mulf %155, %159 : vector<2x32xf32>
    %161 = arith.truncf %160 : vector<2x32xf32> to vector<2x32xbf16>
    %c2 = arith.constant 2 : index
    %c0_73 = arith.constant 0 : index
    %162 = vector.load %arg14[%c2, %c0_73] : memref<16x32xbf16, #tpu.memory_space<vmem>>, vector<2x32xbf16>
    tpu.vector_store %arg14[%c2, %c0_73], %161 {strides = array<i32>} : memref<16x32xbf16, #tpu.memory_space<vmem>>, vector<2x32xbf16>,
    %163 = vector.extract_strided_slice %5 {offsets = [6, 0], sizes = [2, 128], strides = [1, 1]} : vector<16x128xf32> to vector<2x128xf32>
    %164 = arith.truncf %128 : vector<2x32xf32> to vector<2x32xbf16>
    %c0_74 = arith.constant 0 : index
    %c0_75 = arith.constant 0 : index
    %165 = vector.load %arg2[%c0_74, %c0_75] : memref<32x128xbf16, #tpu.memory_space<vmem>>, vector<32x128xbf16>
    %cst_76 = arith.constant dense<0.000000e+00> : vector<2x128xf32>
    %166 = tpu.matmul %164, %165, %cst_76 {dimension_numbers = #tpu.dot_dimension_numbers<[1], [0], [0], [1], [0, 0, 1, 1], [], []>} : vector<2x32xbf16>, vector<32x128xbf16>, vector<2x128xf32> -> vector<2x128xf32>
    %167 = arith.addf %163, %166 : vector<2x128xf32>
    %168 = math.tanh %167 : vector<2x128xf32>
    %169 = vector.extract_strided_slice %168 {offsets = [0, 0], sizes = [2, 32], strides = [1, 1]} : vector<2x128xf32> to vector<2x32xf32>
    %cst_77 = arith.constant 5.000000e-01 : f32
    %170 = vector.broadcast %cst_77 : f32 to vector<2x32xf32>
    %171 = arith.mulf %170, %169 : vector<2x32xf32>
    %cst_78 = arith.constant 5.000000e-01 : f32
    %172 = vector.broadcast %cst_78 : f32 to vector<2x32xf32>
    %173 = arith.addf %171, %172 : vector<2x32xf32>
    %174 = vector.extract_strided_slice %168 {offsets = [0, 32], sizes = [2, 32], strides = [1, 1]} : vector<2x128xf32> to vector<2x32xf32>
    %cst_79 = arith.constant 5.000000e-01 : f32
    %175 = vector.broadcast %cst_79 : f32 to vector<2x32xf32>
    %176 = arith.mulf %175, %174 : vector<2x32xf32>
    %cst_80 = arith.constant 5.000000e-01 : f32
    %177 = vector.broadcast %cst_80 : f32 to vector<2x32xf32>
    %178 = arith.addf %176, %177 : vector<2x32xf32>
    %179 = vector.extract_strided_slice %168 {offsets = [0, 64], sizes = [2, 32], strides = [1, 1]} : vector<2x128xf32> to vector<2x32xf32>
    %180 = vector.extract_strided_slice %168 {offsets = [0, 96], sizes = [2, 32], strides = [1, 1]} : vector<2x128xf32> to vector<2x32xf32>
    %cst_81 = arith.constant 5.000000e-01 : f32
    %181 = vector.broadcast %cst_81 : f32 to vector<2x32xf32>
    %182 = arith.mulf %181, %180 : vector<2x32xf32>
    %cst_82 = arith.constant 5.000000e-01 : f32
    %183 = vector.broadcast %cst_82 : f32 to vector<2x32xf32>
    %184 = arith.addf %182, %183 : vector<2x32xf32>
    %185 = arith.mulf %178, %126 : vector<2x32xf32>
    %186 = arith.mulf %173, %179 : vector<2x32xf32>
    %187 = arith.addf %185, %186 : vector<2x32xf32>
    %188 = math.tanh %187 : vector<2x32xf32>
    %189 = arith.mulf %184, %188 : vector<2x32xf32>
    %190 = arith.truncf %128 : vector<2x32xf32> to vector<2x32xbf16>
    %c0_83 = arith.constant 0 : index
    %c0_84 = arith.constant 0 : index
    %191 = vector.load %arg4[%c0_83, %c0_84] : memref<32x128xbf16, #tpu.memory_space<vmem>>, vector<32x128xbf16>
    %cst_85 = arith.constant dense<0.000000e+00> : vector<2x128xf32>
    %192 = tpu.matmul %190, %191, %cst_85 {dimension_numbers = #tpu.dot_dimension_numbers<[1], [0], [0], [1], [0, 0, 1, 1], [], []>} : vector<2x32xbf16>, vector<32x128xbf16>, vector<2x128xf32> -> vector<2x128xf32>
    %193 = arith.truncf %160 : vector<2x32xf32> to vector<2x32xbf16>
    %c0_86 = arith.constant 0 : index
    %c0_87 = arith.constant 0 : index
    %194 = vector.load %arg5[%c0_86, %c0_87] : memref<32x128xbf16, #tpu.memory_space<vmem>>, vector<32x128xbf16>
    %cst_88 = arith.constant dense<0.000000e+00> : vector<2x128xf32>
    %195 = tpu.matmul %193, %194, %cst_88 {dimension_numbers = #tpu.dot_dimension_numbers<[1], [0], [0], [1], [0, 0, 1, 1], [], []>} : vector<2x32xbf16>, vector<32x128xbf16>, vector<2x128xf32> -> vector<2x128xf32>
    %196 = arith.addf %192, %195 : vector<2x128xf32>
    %c0_89 = arith.constant 0 : index
    %c0_90 = arith.constant 0 : index
    %197 = vector.load %arg6[%c0_89, %c0_90] : memref<1x128xf32, #tpu.memory_space<vmem>>, vector<1x128xf32>
    %198 = vector.broadcast %197 : vector<1x128xf32> to vector<2x128xf32>
    %199 = arith.addf %196, %198 : vector<2x128xf32>
    %200 = math.tanh %199 : vector<2x128xf32>
    %201 = vector.extract_strided_slice %200 {offsets = [0, 0], sizes = [2, 32], strides = [1, 1]} : vector<2x128xf32> to vector<2x32xf32>
    %cst_91 = arith.constant 5.000000e-01 : f32
    %202 = vector.broadcast %cst_91 : f32 to vector<2x32xf32>
    %203 = arith.mulf %202, %201 : vector<2x32xf32>
    %cst_92 = arith.constant 5.000000e-01 : f32
    %204 = vector.broadcast %cst_92 : f32 to vector<2x32xf32>
    %205 = arith.addf %203, %204 : vector<2x32xf32>
    %206 = vector.extract_strided_slice %200 {offsets = [0, 32], sizes = [2, 32], strides = [1, 1]} : vector<2x128xf32> to vector<2x32xf32>
    %cst_93 = arith.constant 5.000000e-01 : f32
    %207 = vector.broadcast %cst_93 : f32 to vector<2x32xf32>
    %208 = arith.mulf %207, %206 : vector<2x32xf32>
    %cst_94 = arith.constant 5.000000e-01 : f32
    %209 = vector.broadcast %cst_94 : f32 to vector<2x32xf32>
    %210 = arith.addf %208, %209 : vector<2x32xf32>
    %211 = vector.extract_strided_slice %200 {offsets = [0, 64], sizes = [2, 32], strides = [1, 1]} : vector<2x128xf32> to vector<2x32xf32>
    %212 = vector.extract_strided_slice %200 {offsets = [0, 96], sizes = [2, 32], strides = [1, 1]} : vector<2x128xf32> to vector<2x32xf32>
    %cst_95 = arith.constant 5.000000e-01 : f32
    %213 = vector.broadcast %cst_95 : f32 to vector<2x32xf32>
    %214 = arith.mulf %213, %212 : vector<2x32xf32>
    %cst_96 = arith.constant 5.000000e-01 : f32
    %215 = vector.broadcast %cst_96 : f32 to vector<2x32xf32>
    %216 = arith.addf %214, %215 : vector<2x32xf32>
    %217 = arith.mulf %210, %158 : vector<2x32xf32>
    %218 = arith.mulf %205, %211 : vector<2x32xf32>
    %219 = arith.addf %217, %218 : vector<2x32xf32>
    %220 = math.tanh %219 : vector<2x32xf32>
    %221 = arith.mulf %216, %220 : vector<2x32xf32>
    %222 = arith.truncf %221 : vector<2x32xf32> to vector<2x32xbf16>
    %c4 = arith.constant 4 : index
    %c0_97 = arith.constant 0 : index
    %223 = vector.load %arg14[%c4, %c0_97] : memref<16x32xbf16, #tpu.memory_space<vmem>>, vector<2x32xbf16>
    tpu.vector_store %arg14[%c4, %c0_97], %222 {strides = array<i32>} : memref<16x32xbf16, #tpu.memory_space<vmem>>, vector<2x32xbf16>,
    %224 = vector.extract_strided_slice %5 {offsets = [8, 0], sizes = [2, 128], strides = [1, 1]} : vector<16x128xf32> to vector<2x128xf32>
    %225 = arith.truncf %189 : vector<2x32xf32> to vector<2x32xbf16>
    %c0_98 = arith.constant 0 : index
    %c0_99 = arith.constant 0 : index
    %226 = vector.load %arg2[%c0_98, %c0_99] : memref<32x128xbf16, #tpu.memory_space<vmem>>, vector<32x128xbf16>
    %cst_100 = arith.constant dense<0.000000e+00> : vector<2x128xf32>
    %227 = tpu.matmul %225, %226, %cst_100 {dimension_numbers = #tpu.dot_dimension_numbers<[1], [0], [0], [1], [0, 0, 1, 1], [], []>} : vector<2x32xbf16>, vector<32x128xbf16>, vector<2x128xf32> -> vector<2x128xf32>
    %228 = arith.addf %224, %227 : vector<2x128xf32>
    %229 = math.tanh %228 : vector<2x128xf32>
    %230 = vector.extract_strided_slice %229 {offsets = [0, 0], sizes = [2, 32], strides = [1, 1]} : vector<2x128xf32> to vector<2x32xf32>
    %cst_101 = arith.constant 5.000000e-01 : f32
    %231 = vector.broadcast %cst_101 : f32 to vector<2x32xf32>
    %232 = arith.mulf %231, %230 : vector<2x32xf32>
    %cst_102 = arith.constant 5.000000e-01 : f32
    %233 = vector.broadcast %cst_102 : f32 to vector<2x32xf32>
    %234 = arith.addf %232, %233 : vector<2x32xf32>
    %235 = vector.extract_strided_slice %229 {offsets = [0, 32], sizes = [2, 32], strides = [1, 1]} : vector<2x128xf32> to vector<2x32xf32>
    %cst_103 = arith.constant 5.000000e-01 : f32
    %236 = vector.broadcast %cst_103 : f32 to vector<2x32xf32>
    %237 = arith.mulf %236, %235 : vector<2x32xf32>
    %cst_104 = arith.constant 5.000000e-01 : f32
    %238 = vector.broadcast %cst_104 : f32 to vector<2x32xf32>
    %239 = arith.addf %237, %238 : vector<2x32xf32>
    %240 = vector.extract_strided_slice %229 {offsets = [0, 64], sizes = [2, 32], strides = [1, 1]} : vector<2x128xf32> to vector<2x32xf32>
    %241 = vector.extract_strided_slice %229 {offsets = [0, 96], sizes = [2, 32], strides = [1, 1]} : vector<2x128xf32> to vector<2x32xf32>
    %cst_105 = arith.constant 5.000000e-01 : f32
    %242 = vector.broadcast %cst_105 : f32 to vector<2x32xf32>
    %243 = arith.mulf %242, %241 : vector<2x32xf32>
    %cst_106 = arith.constant 5.000000e-01 : f32
    %244 = vector.broadcast %cst_106 : f32 to vector<2x32xf32>
    %245 = arith.addf %243, %244 : vector<2x32xf32>
    %246 = arith.mulf %239, %187 : vector<2x32xf32>
    %247 = arith.mulf %234, %240 : vector<2x32xf32>
    %248 = arith.addf %246, %247 : vector<2x32xf32>
    %249 = math.tanh %248 : vector<2x32xf32>
    %250 = arith.mulf %245, %249 : vector<2x32xf32>
    %251 = arith.truncf %189 : vector<2x32xf32> to vector<2x32xbf16>
    %c0_107 = arith.constant 0 : index
    %c0_108 = arith.constant 0 : index
    %252 = vector.load %arg4[%c0_107, %c0_108] : memref<32x128xbf16, #tpu.memory_space<vmem>>, vector<32x128xbf16>
    %cst_109 = arith.constant dense<0.000000e+00> : vector<2x128xf32>
    %253 = tpu.matmul %251, %252, %cst_109 {dimension_numbers = #tpu.dot_dimension_numbers<[1], [0], [0], [1], [0, 0, 1, 1], [], []>} : vector<2x32xbf16>, vector<32x128xbf16>, vector<2x128xf32> -> vector<2x128xf32>
    %254 = arith.truncf %221 : vector<2x32xf32> to vector<2x32xbf16>
    %c0_110 = arith.constant 0 : index
    %c0_111 = arith.constant 0 : index
    %255 = vector.load %arg5[%c0_110, %c0_111] : memref<32x128xbf16, #tpu.memory_space<vmem>>, vector<32x128xbf16>
    %cst_112 = arith.constant dense<0.000000e+00> : vector<2x128xf32>
    %256 = tpu.matmul %254, %255, %cst_112 {dimension_numbers = #tpu.dot_dimension_numbers<[1], [0], [0], [1], [0, 0, 1, 1], [], []>} : vector<2x32xbf16>, vector<32x128xbf16>, vector<2x128xf32> -> vector<2x128xf32>
    %257 = arith.addf %253, %256 : vector<2x128xf32>
    %c0_113 = arith.constant 0 : index
    %c0_114 = arith.constant 0 : index
    %258 = vector.load %arg6[%c0_113, %c0_114] : memref<1x128xf32, #tpu.memory_space<vmem>>, vector<1x128xf32>
    %259 = vector.broadcast %258 : vector<1x128xf32> to vector<2x128xf32>
    %260 = arith.addf %257, %259 : vector<2x128xf32>
    %261 = math.tanh %260 : vector<2x128xf32>
    %262 = vector.extract_strided_slice %261 {offsets = [0, 0], sizes = [2, 32], strides = [1, 1]} : vector<2x128xf32> to vector<2x32xf32>
    %cst_115 = arith.constant 5.000000e-01 : f32
    %263 = vector.broadcast %cst_115 : f32 to vector<2x32xf32>
    %264 = arith.mulf %263, %262 : vector<2x32xf32>
    %cst_116 = arith.constant 5.000000e-01 : f32
    %265 = vector.broadcast %cst_116 : f32 to vector<2x32xf32>
    %266 = arith.addf %264, %265 : vector<2x32xf32>
    %267 = vector.extract_strided_slice %261 {offsets = [0, 32], sizes = [2, 32], strides = [1, 1]} : vector<2x128xf32> to vector<2x32xf32>
    %cst_117 = arith.constant 5.000000e-01 : f32
    %268 = vector.broadcast %cst_117 : f32 to vector<2x32xf32>
    %269 = arith.mulf %268, %267 : vector<2x32xf32>
    %cst_118 = arith.constant 5.000000e-01 : f32
    %270 = vector.broadcast %cst_118 : f32 to vector<2x32xf32>
    %271 = arith.addf %269, %270 : vector<2x32xf32>
    %272 = vector.extract_strided_slice %261 {offsets = [0, 64], sizes = [2, 32], strides = [1, 1]} : vector<2x128xf32> to vector<2x32xf32>
    %273 = vector.extract_strided_slice %261 {offsets = [0, 96], sizes = [2, 32], strides = [1, 1]} : vector<2x128xf32> to vector<2x32xf32>
    %cst_119 = arith.constant 5.000000e-01 : f32
    %274 = vector.broadcast %cst_119 : f32 to vector<2x32xf32>
    %275 = arith.mulf %274, %273 : vector<2x32xf32>
    %cst_120 = arith.constant 5.000000e-01 : f32
    %276 = vector.broadcast %cst_120 : f32 to vector<2x32xf32>
    %277 = arith.addf %275, %276 : vector<2x32xf32>
    %278 = arith.mulf %271, %219 : vector<2x32xf32>
    %279 = arith.mulf %266, %272 : vector<2x32xf32>
    %280 = arith.addf %278, %279 : vector<2x32xf32>
    %281 = math.tanh %280 : vector<2x32xf32>
    %282 = arith.mulf %277, %281 : vector<2x32xf32>
    %283 = arith.truncf %282 : vector<2x32xf32> to vector<2x32xbf16>
    %c6 = arith.constant 6 : index
    %c0_121 = arith.constant 0 : index
    %284 = vector.load %arg14[%c6, %c0_121] : memref<16x32xbf16, #tpu.memory_space<vmem>>, vector<2x32xbf16>
    tpu.vector_store %arg14[%c6, %c0_121], %283 {strides = array<i32>} : memref<16x32xbf16, #tpu.memory_space<vmem>>, vector<2x32xbf16>,
    %285 = vector.extract_strided_slice %5 {offsets = [10, 0], sizes = [2, 128], strides = [1, 1]} : vector<16x128xf32> to vector<2x128xf32>
    %286 = arith.truncf %250 : vector<2x32xf32> to vector<2x32xbf16>
    %c0_122 = arith.constant 0 : index
    %c0_123 = arith.constant 0 : index
    %287 = vector.load %arg2[%c0_122, %c0_123] : memref<32x128xbf16, #tpu.memory_space<vmem>>, vector<32x128xbf16>
    %cst_124 = arith.constant dense<0.000000e+00> : vector<2x128xf32>
    %288 = tpu.matmul %286, %287, %cst_124 {dimension_numbers = #tpu.dot_dimension_numbers<[1], [0], [0], [1], [0, 0, 1, 1], [], []>} : vector<2x32xbf16>, vector<32x128xbf16>, vector<2x128xf32> -> vector<2x128xf32>
    %289 = arith.addf %285, %288 : vector<2x128xf32>
    %290 = math.tanh %289 : vector<2x128xf32>
    %291 = vector.extract_strided_slice %290 {offsets = [0, 0], sizes = [2, 32], strides = [1, 1]} : vector<2x128xf32> to vector<2x32xf32>
    %cst_125 = arith.constant 5.000000e-01 : f32
    %292 = vector.broadcast %cst_125 : f32 to vector<2x32xf32>
    %293 = arith.mulf %292, %291 : vector<2x32xf32>
    %cst_126 = arith.constant 5.000000e-01 : f32
    %294 = vector.broadcast %cst_126 : f32 to vector<2x32xf32>
    %295 = arith.addf %293, %294 : vector<2x32xf32>
    %296 = vector.extract_strided_slice %290 {offsets = [0, 32], sizes = [2, 32], strides = [1, 1]} : vector<2x128xf32> to vector<2x32xf32>
    %cst_127 = arith.constant 5.000000e-01 : f32
    %297 = vector.broadcast %cst_127 : f32 to vector<2x32xf32>
    %298 = arith.mulf %297, %296 : vector<2x32xf32>
    %cst_128 = arith.constant 5.000000e-01 : f32
    %299 = vector.broadcast %cst_128 : f32 to vector<2x32xf32>
    %300 = arith.addf %298, %299 : vector<2x32xf32>
    %301 = vector.extract_strided_slice %290 {offsets = [0, 64], sizes = [2, 32], strides = [1, 1]} : vector<2x128xf32> to vector<2x32xf32>
    %302 = vector.extract_strided_slice %290 {offsets = [0, 96], sizes = [2, 32], strides = [1, 1]} : vector<2x128xf32> to vector<2x32xf32>
    %cst_129 = arith.constant 5.000000e-01 : f32
    %303 = vector.broadcast %cst_129 : f32 to vector<2x32xf32>
    %304 = arith.mulf %303, %302 : vector<2x32xf32>
    %cst_130 = arith.constant 5.000000e-01 : f32
    %305 = vector.broadcast %cst_130 : f32 to vector<2x32xf32>
    %306 = arith.addf %304, %305 : vector<2x32xf32>
    %307 = arith.mulf %300, %248 : vector<2x32xf32>
    %308 = arith.mulf %295, %301 : vector<2x32xf32>
    %309 = arith.addf %307, %308 : vector<2x32xf32>
    %310 = math.tanh %309 : vector<2x32xf32>
    %311 = arith.mulf %306, %310 : vector<2x32xf32>
    %312 = arith.truncf %250 : vector<2x32xf32> to vector<2x32xbf16>
    %c0_131 = arith.constant 0 : index
    %c0_132 = arith.constant 0 : index
    %313 = vector.load %arg4[%c0_131, %c0_132] : memref<32x128xbf16, #tpu.memory_space<vmem>>, vector<32x128xbf16>
    %cst_133 = arith.constant dense<0.000000e+00> : vector<2x128xf32>
    %314 = tpu.matmul %312, %313, %cst_133 {dimension_numbers = #tpu.dot_dimension_numbers<[1], [0], [0], [1], [0, 0, 1, 1], [], []>} : vector<2x32xbf16>, vector<32x128xbf16>, vector<2x128xf32> -> vector<2x128xf32>
    %315 = arith.truncf %282 : vector<2x32xf32> to vector<2x32xbf16>
    %c0_134 = arith.constant 0 : index
    %c0_135 = arith.constant 0 : index
    %316 = vector.load %arg5[%c0_134, %c0_135] : memref<32x128xbf16, #tpu.memory_space<vmem>>, vector<32x128xbf16>
    %cst_136 = arith.constant dense<0.000000e+00> : vector<2x128xf32>
    %317 = tpu.matmul %315, %316, %cst_136 {dimension_numbers = #tpu.dot_dimension_numbers<[1], [0], [0], [1], [0, 0, 1, 1], [], []>} : vector<2x32xbf16>, vector<32x128xbf16>, vector<2x128xf32> -> vector<2x128xf32>
    %318 = arith.addf %314, %317 : vector<2x128xf32>
    %c0_137 = arith.constant 0 : index
    %c0_138 = arith.constant 0 : index
    %319 = vector.load %arg6[%c0_137, %c0_138] : memref<1x128xf32, #tpu.memory_space<vmem>>, vector<1x128xf32>
    %320 = vector.broadcast %319 : vector<1x128xf32> to vector<2x128xf32>
    %321 = arith.addf %318, %320 : vector<2x128xf32>
    %322 = math.tanh %321 : vector<2x128xf32>
    %323 = vector.extract_strided_slice %322 {offsets = [0, 0], sizes = [2, 32], strides = [1, 1]} : vector<2x128xf32> to vector<2x32xf32>
    %cst_139 = arith.constant 5.000000e-01 : f32
    %324 = vector.broadcast %cst_139 : f32 to vector<2x32xf32>
    %325 = arith.mulf %324, %323 : vector<2x32xf32>
    %cst_140 = arith.constant 5.000000e-01 : f32
    %326 = vector.broadcast %cst_140 : f32 to vector<2x32xf32>
    %327 = arith.addf %325, %326 : vector<2x32xf32>
    %328 = vector.extract_strided_slice %322 {offsets = [0, 32], sizes = [2, 32], strides = [1, 1]} : vector<2x128xf32> to vector<2x32xf32>
    %cst_141 = arith.constant 5.000000e-01 : f32
    %329 = vector.broadcast %cst_141 : f32 to vector<2x32xf32>
    %330 = arith.mulf %329, %328 : vector<2x32xf32>
    %cst_142 = arith.constant 5.000000e-01 : f32
    %331 = vector.broadcast %cst_142 : f32 to vector<2x32xf32>
    %332 = arith.addf %330, %331 : vector<2x32xf32>
    %333 = vector.extract_strided_slice %322 {offsets = [0, 64], sizes = [2, 32], strides = [1, 1]} : vector<2x128xf32> to vector<2x32xf32>
    %334 = vector.extract_strided_slice %322 {offsets = [0, 96], sizes = [2, 32], strides = [1, 1]} : vector<2x128xf32> to vector<2x32xf32>
    %cst_143 = arith.constant 5.000000e-01 : f32
    %335 = vector.broadcast %cst_143 : f32 to vector<2x32xf32>
    %336 = arith.mulf %335, %334 : vector<2x32xf32>
    %cst_144 = arith.constant 5.000000e-01 : f32
    %337 = vector.broadcast %cst_144 : f32 to vector<2x32xf32>
    %338 = arith.addf %336, %337 : vector<2x32xf32>
    %339 = arith.mulf %332, %280 : vector<2x32xf32>
    %340 = arith.mulf %327, %333 : vector<2x32xf32>
    %341 = arith.addf %339, %340 : vector<2x32xf32>
    %342 = math.tanh %341 : vector<2x32xf32>
    %343 = arith.mulf %338, %342 : vector<2x32xf32>
    %344 = arith.truncf %343 : vector<2x32xf32> to vector<2x32xbf16>
    %c8 = arith.constant 8 : index
    %c0_145 = arith.constant 0 : index
    %345 = vector.load %arg14[%c8, %c0_145] : memref<16x32xbf16, #tpu.memory_space<vmem>>, vector<2x32xbf16>
    tpu.vector_store %arg14[%c8, %c0_145], %344 {strides = array<i32>} : memref<16x32xbf16, #tpu.memory_space<vmem>>, vector<2x32xbf16>,
    %346 = vector.extract_strided_slice %5 {offsets = [12, 0], sizes = [2, 128], strides = [1, 1]} : vector<16x128xf32> to vector<2x128xf32>
    %347 = arith.truncf %311 : vector<2x32xf32> to vector<2x32xbf16>
    %c0_146 = arith.constant 0 : index
    %c0_147 = arith.constant 0 : index
    %348 = vector.load %arg2[%c0_146, %c0_147] : memref<32x128xbf16, #tpu.memory_space<vmem>>, vector<32x128xbf16>
    %cst_148 = arith.constant dense<0.000000e+00> : vector<2x128xf32>
    %349 = tpu.matmul %347, %348, %cst_148 {dimension_numbers = #tpu.dot_dimension_numbers<[1], [0], [0], [1], [0, 0, 1, 1], [], []>} : vector<2x32xbf16>, vector<32x128xbf16>, vector<2x128xf32> -> vector<2x128xf32>
    %350 = arith.addf %346, %349 : vector<2x128xf32>
    %351 = math.tanh %350 : vector<2x128xf32>
    %352 = vector.extract_strided_slice %351 {offsets = [0, 0], sizes = [2, 32], strides = [1, 1]} : vector<2x128xf32> to vector<2x32xf32>
    %cst_149 = arith.constant 5.000000e-01 : f32
    %353 = vector.broadcast %cst_149 : f32 to vector<2x32xf32>
    %354 = arith.mulf %353, %352 : vector<2x32xf32>
    %cst_150 = arith.constant 5.000000e-01 : f32
    %355 = vector.broadcast %cst_150 : f32 to vector<2x32xf32>
    %356 = arith.addf %354, %355 : vector<2x32xf32>
    %357 = vector.extract_strided_slice %351 {offsets = [0, 32], sizes = [2, 32], strides = [1, 1]} : vector<2x128xf32> to vector<2x32xf32>
    %cst_151 = arith.constant 5.000000e-01 : f32
    %358 = vector.broadcast %cst_151 : f32 to vector<2x32xf32>
    %359 = arith.mulf %358, %357 : vector<2x32xf32>
    %cst_152 = arith.constant 5.000000e-01 : f32
    %360 = vector.broadcast %cst_152 : f32 to vector<2x32xf32>
    %361 = arith.addf %359, %360 : vector<2x32xf32>
    %362 = vector.extract_strided_slice %351 {offsets = [0, 64], sizes = [2, 32], strides = [1, 1]} : vector<2x128xf32> to vector<2x32xf32>
    %363 = vector.extract_strided_slice %351 {offsets = [0, 96], sizes = [2, 32], strides = [1, 1]} : vector<2x128xf32> to vector<2x32xf32>
    %cst_153 = arith.constant 5.000000e-01 : f32
    %364 = vector.broadcast %cst_153 : f32 to vector<2x32xf32>
    %365 = arith.mulf %364, %363 : vector<2x32xf32>
    %cst_154 = arith.constant 5.000000e-01 : f32
    %366 = vector.broadcast %cst_154 : f32 to vector<2x32xf32>
    %367 = arith.addf %365, %366 : vector<2x32xf32>
    %368 = arith.mulf %361, %309 : vector<2x32xf32>
    %369 = arith.mulf %356, %362 : vector<2x32xf32>
    %370 = arith.addf %368, %369 : vector<2x32xf32>
    %371 = math.tanh %370 : vector<2x32xf32>
    %372 = arith.mulf %367, %371 : vector<2x32xf32>
    %373 = arith.truncf %311 : vector<2x32xf32> to vector<2x32xbf16>
    %c0_155 = arith.constant 0 : index
    %c0_156 = arith.constant 0 : index
    %374 = vector.load %arg4[%c0_155, %c0_156] : memref<32x128xbf16, #tpu.memory_space<vmem>>, vector<32x128xbf16>
    %cst_157 = arith.constant dense<0.000000e+00> : vector<2x128xf32>
    %375 = tpu.matmul %373, %374, %cst_157 {dimension_numbers = #tpu.dot_dimension_numbers<[1], [0], [0], [1], [0, 0, 1, 1], [], []>} : vector<2x32xbf16>, vector<32x128xbf16>, vector<2x128xf32> -> vector<2x128xf32>
    %376 = arith.truncf %343 : vector<2x32xf32> to vector<2x32xbf16>
    %c0_158 = arith.constant 0 : index
    %c0_159 = arith.constant 0 : index
    %377 = vector.load %arg5[%c0_158, %c0_159] : memref<32x128xbf16, #tpu.memory_space<vmem>>, vector<32x128xbf16>
    %cst_160 = arith.constant dense<0.000000e+00> : vector<2x128xf32>
    %378 = tpu.matmul %376, %377, %cst_160 {dimension_numbers = #tpu.dot_dimension_numbers<[1], [0], [0], [1], [0, 0, 1, 1], [], []>} : vector<2x32xbf16>, vector<32x128xbf16>, vector<2x128xf32> -> vector<2x128xf32>
    %379 = arith.addf %375, %378 : vector<2x128xf32>
    %c0_161 = arith.constant 0 : index
    %c0_162 = arith.constant 0 : index
    %380 = vector.load %arg6[%c0_161, %c0_162] : memref<1x128xf32, #tpu.memory_space<vmem>>, vector<1x128xf32>
    %381 = vector.broadcast %380 : vector<1x128xf32> to vector<2x128xf32>
    %382 = arith.addf %379, %381 : vector<2x128xf32>
    %383 = math.tanh %382 : vector<2x128xf32>
    %384 = vector.extract_strided_slice %383 {offsets = [0, 0], sizes = [2, 32], strides = [1, 1]} : vector<2x128xf32> to vector<2x32xf32>
    %cst_163 = arith.constant 5.000000e-01 : f32
    %385 = vector.broadcast %cst_163 : f32 to vector<2x32xf32>
    %386 = arith.mulf %385, %384 : vector<2x32xf32>
    %cst_164 = arith.constant 5.000000e-01 : f32
    %387 = vector.broadcast %cst_164 : f32 to vector<2x32xf32>
    %388 = arith.addf %386, %387 : vector<2x32xf32>
    %389 = vector.extract_strided_slice %383 {offsets = [0, 32], sizes = [2, 32], strides = [1, 1]} : vector<2x128xf32> to vector<2x32xf32>
    %cst_165 = arith.constant 5.000000e-01 : f32
    %390 = vector.broadcast %cst_165 : f32 to vector<2x32xf32>
    %391 = arith.mulf %390, %389 : vector<2x32xf32>
    %cst_166 = arith.constant 5.000000e-01 : f32
    %392 = vector.broadcast %cst_166 : f32 to vector<2x32xf32>
    %393 = arith.addf %391, %392 : vector<2x32xf32>
    %394 = vector.extract_strided_slice %383 {offsets = [0, 64], sizes = [2, 32], strides = [1, 1]} : vector<2x128xf32> to vector<2x32xf32>
    %395 = vector.extract_strided_slice %383 {offsets = [0, 96], sizes = [2, 32], strides = [1, 1]} : vector<2x128xf32> to vector<2x32xf32>
    %cst_167 = arith.constant 5.000000e-01 : f32
    %396 = vector.broadcast %cst_167 : f32 to vector<2x32xf32>
    %397 = arith.mulf %396, %395 : vector<2x32xf32>
    %cst_168 = arith.constant 5.000000e-01 : f32
    %398 = vector.broadcast %cst_168 : f32 to vector<2x32xf32>
    %399 = arith.addf %397, %398 : vector<2x32xf32>
    %400 = arith.mulf %393, %341 : vector<2x32xf32>
    %401 = arith.mulf %388, %394 : vector<2x32xf32>
    %402 = arith.addf %400, %401 : vector<2x32xf32>
    %403 = math.tanh %402 : vector<2x32xf32>
    %404 = arith.mulf %399, %403 : vector<2x32xf32>
    %405 = arith.truncf %404 : vector<2x32xf32> to vector<2x32xbf16>
    %c10 = arith.constant 10 : index
    %c0_169 = arith.constant 0 : index
    %406 = vector.load %arg14[%c10, %c0_169] : memref<16x32xbf16, #tpu.memory_space<vmem>>, vector<2x32xbf16>
    tpu.vector_store %arg14[%c10, %c0_169], %405 {strides = array<i32>} : memref<16x32xbf16, #tpu.memory_space<vmem>>, vector<2x32xbf16>,
    %407 = vector.extract_strided_slice %5 {offsets = [14, 0], sizes = [2, 128], strides = [1, 1]} : vector<16x128xf32> to vector<2x128xf32>
    %408 = arith.truncf %372 : vector<2x32xf32> to vector<2x32xbf16>
    %c0_170 = arith.constant 0 : index
    %c0_171 = arith.constant 0 : index
    %409 = vector.load %arg2[%c0_170, %c0_171] : memref<32x128xbf16, #tpu.memory_space<vmem>>, vector<32x128xbf16>
    %cst_172 = arith.constant dense<0.000000e+00> : vector<2x128xf32>
    %410 = tpu.matmul %408, %409, %cst_172 {dimension_numbers = #tpu.dot_dimension_numbers<[1], [0], [0], [1], [0, 0, 1, 1], [], []>} : vector<2x32xbf16>, vector<32x128xbf16>, vector<2x128xf32> -> vector<2x128xf32>
    %411 = arith.addf %407, %410 : vector<2x128xf32>
    %412 = math.tanh %411 : vector<2x128xf32>
    %413 = vector.extract_strided_slice %412 {offsets = [0, 0], sizes = [2, 32], strides = [1, 1]} : vector<2x128xf32> to vector<2x32xf32>
    %cst_173 = arith.constant 5.000000e-01 : f32
    %414 = vector.broadcast %cst_173 : f32 to vector<2x32xf32>
    %415 = arith.mulf %414, %413 : vector<2x32xf32>
    %cst_174 = arith.constant 5.000000e-01 : f32
    %416 = vector.broadcast %cst_174 : f32 to vector<2x32xf32>
    %417 = arith.addf %415, %416 : vector<2x32xf32>
    %418 = vector.extract_strided_slice %412 {offsets = [0, 32], sizes = [2, 32], strides = [1, 1]} : vector<2x128xf32> to vector<2x32xf32>
    %cst_175 = arith.constant 5.000000e-01 : f32
    %419 = vector.broadcast %cst_175 : f32 to vector<2x32xf32>
    %420 = arith.mulf %419, %418 : vector<2x32xf32>
    %cst_176 = arith.constant 5.000000e-01 : f32
    %421 = vector.broadcast %cst_176 : f32 to vector<2x32xf32>
    %422 = arith.addf %420, %421 : vector<2x32xf32>
    %423 = vector.extract_strided_slice %412 {offsets = [0, 64], sizes = [2, 32], strides = [1, 1]} : vector<2x128xf32> to vector<2x32xf32>
    %424 = vector.extract_strided_slice %412 {offsets = [0, 96], sizes = [2, 32], strides = [1, 1]} : vector<2x128xf32> to vector<2x32xf32>
    %cst_177 = arith.constant 5.000000e-01 : f32
    %425 = vector.broadcast %cst_177 : f32 to vector<2x32xf32>
    %426 = arith.mulf %425, %424 : vector<2x32xf32>
    %cst_178 = arith.constant 5.000000e-01 : f32
    %427 = vector.broadcast %cst_178 : f32 to vector<2x32xf32>
    %428 = arith.addf %426, %427 : vector<2x32xf32>
    %429 = arith.mulf %422, %370 : vector<2x32xf32>
    %430 = arith.mulf %417, %423 : vector<2x32xf32>
    %431 = arith.addf %429, %430 : vector<2x32xf32>
    %432 = math.tanh %431 : vector<2x32xf32>
    %433 = arith.mulf %428, %432 : vector<2x32xf32>
    %434 = arith.truncf %372 : vector<2x32xf32> to vector<2x32xbf16>
    %c0_179 = arith.constant 0 : index
    %c0_180 = arith.constant 0 : index
    %435 = vector.load %arg4[%c0_179, %c0_180] : memref<32x128xbf16, #tpu.memory_space<vmem>>, vector<32x128xbf16>
    %cst_181 = arith.constant dense<0.000000e+00> : vector<2x128xf32>
    %436 = tpu.matmul %434, %435, %cst_181 {dimension_numbers = #tpu.dot_dimension_numbers<[1], [0], [0], [1], [0, 0, 1, 1], [], []>} : vector<2x32xbf16>, vector<32x128xbf16>, vector<2x128xf32> -> vector<2x128xf32>
    %437 = arith.truncf %404 : vector<2x32xf32> to vector<2x32xbf16>
    %c0_182 = arith.constant 0 : index
    %c0_183 = arith.constant 0 : index
    %438 = vector.load %arg5[%c0_182, %c0_183] : memref<32x128xbf16, #tpu.memory_space<vmem>>, vector<32x128xbf16>
    %cst_184 = arith.constant dense<0.000000e+00> : vector<2x128xf32>
    %439 = tpu.matmul %437, %438, %cst_184 {dimension_numbers = #tpu.dot_dimension_numbers<[1], [0], [0], [1], [0, 0, 1, 1], [], []>} : vector<2x32xbf16>, vector<32x128xbf16>, vector<2x128xf32> -> vector<2x128xf32>
    %440 = arith.addf %436, %439 : vector<2x128xf32>
    %c0_185 = arith.constant 0 : index
    %c0_186 = arith.constant 0 : index
    %441 = vector.load %arg6[%c0_185, %c0_186] : memref<1x128xf32, #tpu.memory_space<vmem>>, vector<1x128xf32>
    %442 = vector.broadcast %441 : vector<1x128xf32> to vector<2x128xf32>
    %443 = arith.addf %440, %442 : vector<2x128xf32>
    %444 = math.tanh %443 : vector<2x128xf32>
    %445 = vector.extract_strided_slice %444 {offsets = [0, 0], sizes = [2, 32], strides = [1, 1]} : vector<2x128xf32> to vector<2x32xf32>
    %cst_187 = arith.constant 5.000000e-01 : f32
    %446 = vector.broadcast %cst_187 : f32 to vector<2x32xf32>
    %447 = arith.mulf %446, %445 : vector<2x32xf32>
    %cst_188 = arith.constant 5.000000e-01 : f32
    %448 = vector.broadcast %cst_188 : f32 to vector<2x32xf32>
    %449 = arith.addf %447, %448 : vector<2x32xf32>
    %450 = vector.extract_strided_slice %444 {offsets = [0, 32], sizes = [2, 32], strides = [1, 1]} : vector<2x128xf32> to vector<2x32xf32>
    %cst_189 = arith.constant 5.000000e-01 : f32
    %451 = vector.broadcast %cst_189 : f32 to vector<2x32xf32>
    %452 = arith.mulf %451, %450 : vector<2x32xf32>
    %cst_190 = arith.constant 5.000000e-01 : f32
    %453 = vector.broadcast %cst_190 : f32 to vector<2x32xf32>
    %454 = arith.addf %452, %453 : vector<2x32xf32>
    %455 = vector.extract_strided_slice %444 {offsets = [0, 64], sizes = [2, 32], strides = [1, 1]} : vector<2x128xf32> to vector<2x32xf32>
    %456 = vector.extract_strided_slice %444 {offsets = [0, 96], sizes = [2, 32], strides = [1, 1]} : vector<2x128xf32> to vector<2x32xf32>
    %cst_191 = arith.constant 5.000000e-01 : f32
    %457 = vector.broadcast %cst_191 : f32 to vector<2x32xf32>
    %458 = arith.mulf %457, %456 : vector<2x32xf32>
    %cst_192 = arith.constant 5.000000e-01 : f32
    %459 = vector.broadcast %cst_192 : f32 to vector<2x32xf32>
    %460 = arith.addf %458, %459 : vector<2x32xf32>
    %461 = arith.mulf %454, %402 : vector<2x32xf32>
    %462 = arith.mulf %449, %455 : vector<2x32xf32>
    %463 = arith.addf %461, %462 : vector<2x32xf32>
    %464 = math.tanh %463 : vector<2x32xf32>
    %465 = arith.mulf %460, %464 : vector<2x32xf32>
    %466 = arith.truncf %465 : vector<2x32xf32> to vector<2x32xbf16>
    %c12 = arith.constant 12 : index
    %c0_193 = arith.constant 0 : index
    %467 = vector.load %arg14[%c12, %c0_193] : memref<16x32xbf16, #tpu.memory_space<vmem>>, vector<2x32xbf16>
    tpu.vector_store %arg14[%c12, %c0_193], %466 {strides = array<i32>} : memref<16x32xbf16, #tpu.memory_space<vmem>>, vector<2x32xbf16>,
    %468 = arith.truncf %433 : vector<2x32xf32> to vector<2x32xbf16>
    %c0_194 = arith.constant 0 : index
    %c0_195 = arith.constant 0 : index
    %469 = vector.load %arg4[%c0_194, %c0_195] : memref<32x128xbf16, #tpu.memory_space<vmem>>, vector<32x128xbf16>
    %cst_196 = arith.constant dense<0.000000e+00> : vector<2x128xf32>
    %470 = tpu.matmul %468, %469, %cst_196 {dimension_numbers = #tpu.dot_dimension_numbers<[1], [0], [0], [1], [0, 0, 1, 1], [], []>} : vector<2x32xbf16>, vector<32x128xbf16>, vector<2x128xf32> -> vector<2x128xf32>
    %471 = arith.truncf %465 : vector<2x32xf32> to vector<2x32xbf16>
    %c0_197 = arith.constant 0 : index
    %c0_198 = arith.constant 0 : index
    %472 = vector.load %arg5[%c0_197, %c0_198] : memref<32x128xbf16, #tpu.memory_space<vmem>>, vector<32x128xbf16>
    %cst_199 = arith.constant dense<0.000000e+00> : vector<2x128xf32>
    %473 = tpu.matmul %471, %472, %cst_199 {dimension_numbers = #tpu.dot_dimension_numbers<[1], [0], [0], [1], [0, 0, 1, 1], [], []>} : vector<2x32xbf16>, vector<32x128xbf16>, vector<2x128xf32> -> vector<2x128xf32>
    %474 = arith.addf %470, %473 : vector<2x128xf32>
    %c0_200 = arith.constant 0 : index
    %c0_201 = arith.constant 0 : index
    %475 = vector.load %arg6[%c0_200, %c0_201] : memref<1x128xf32, #tpu.memory_space<vmem>>, vector<1x128xf32>
    %476 = vector.broadcast %475 : vector<1x128xf32> to vector<2x128xf32>
    %477 = arith.addf %474, %476 : vector<2x128xf32>
    %478 = math.tanh %477 : vector<2x128xf32>
    %479 = vector.extract_strided_slice %478 {offsets = [0, 0], sizes = [2, 32], strides = [1, 1]} : vector<2x128xf32> to vector<2x32xf32>
    %cst_202 = arith.constant 5.000000e-01 : f32
    %480 = vector.broadcast %cst_202 : f32 to vector<2x32xf32>
    %481 = arith.mulf %480, %479 : vector<2x32xf32>
    %cst_203 = arith.constant 5.000000e-01 : f32
    %482 = vector.broadcast %cst_203 : f32 to vector<2x32xf32>
    %483 = arith.addf %481, %482 : vector<2x32xf32>
    %484 = vector.extract_strided_slice %478 {offsets = [0, 32], sizes = [2, 32], strides = [1, 1]} : vector<2x128xf32> to vector<2x32xf32>
    %cst_204 = arith.constant 5.000000e-01 : f32
    %485 = vector.broadcast %cst_204 : f32 to vector<2x32xf32>
    %486 = arith.mulf %485, %484 : vector<2x32xf32>
    %cst_205 = arith.constant 5.000000e-01 : f32
    %487 = vector.broadcast %cst_205 : f32 to vector<2x32xf32>
    %488 = arith.addf %486, %487 : vector<2x32xf32>
    %489 = vector.extract_strided_slice %478 {offsets = [0, 64], sizes = [2, 32], strides = [1, 1]} : vector<2x128xf32> to vector<2x32xf32>
    %490 = vector.extract_strided_slice %478 {offsets = [0, 96], sizes = [2, 32], strides = [1, 1]} : vector<2x128xf32> to vector<2x32xf32>
    %cst_206 = arith.constant 5.000000e-01 : f32
    %491 = vector.broadcast %cst_206 : f32 to vector<2x32xf32>
    %492 = arith.mulf %491, %490 : vector<2x32xf32>
    %cst_207 = arith.constant 5.000000e-01 : f32
    %493 = vector.broadcast %cst_207 : f32 to vector<2x32xf32>
    %494 = arith.addf %492, %493 : vector<2x32xf32>
    %495 = arith.mulf %488, %463 : vector<2x32xf32>
    %496 = arith.mulf %483, %489 : vector<2x32xf32>
    %497 = arith.addf %495, %496 : vector<2x32xf32>
    %498 = math.tanh %497 : vector<2x32xf32>
    %499 = arith.mulf %494, %498 : vector<2x32xf32>
    %500 = arith.truncf %499 : vector<2x32xf32> to vector<2x32xbf16>
    %c14 = arith.constant 14 : index
    %c0_208 = arith.constant 0 : index
    %501 = vector.load %arg14[%c14, %c0_208] : memref<16x32xbf16, #tpu.memory_space<vmem>>, vector<2x32xbf16>
    tpu.vector_store %arg14[%c14, %c0_208], %500 {strides = array<i32>} : memref<16x32xbf16, #tpu.memory_space<vmem>>, vector<2x32xbf16>,
    %c0_209 = arith.constant 0 : index
    %c0_210 = arith.constant 0 : index
    %c0_211 = arith.constant 0 : index
    %502 = vector.load %arg12[%c0_209, %c0_210, %c0_211] : memref<2x2x32xf32, #tpu.memory_space<vmem>>, vector<1x2x32xf32>
    %503 = vector.shape_cast %502 : vector<1x2x32xf32> to vector<2x32xf32>
    %504 = vector.shape_cast %433 : vector<2x32xf32> to vector<1x2x32xf32>
    tpu.vector_store %arg12[%c0_209, %c0_210, %c0_211], %504 {strides = array<i32>} : memref<2x2x32xf32, #tpu.memory_space<vmem>>, vector<1x2x32xf32>,
    %c0_212 = arith.constant 0 : index
    %c0_213 = arith.constant 0 : index
    %c0_214 = arith.constant 0 : index
    %505 = vector.load %arg13[%c0_212, %c0_213, %c0_214] : memref<2x2x32xf32, #tpu.memory_space<vmem>>, vector<1x2x32xf32>
    %506 = vector.shape_cast %505 : vector<1x2x32xf32> to vector<2x32xf32>
    %507 = vector.shape_cast %431 : vector<2x32xf32> to vector<1x2x32xf32>
    tpu.vector_store %arg13[%c0_212, %c0_213, %c0_214], %507 {strides = array<i32>} : memref<2x2x32xf32, #tpu.memory_space<vmem>>, vector<1x2x32xf32>,
    %c1_215 = arith.constant 1 : index
    %c0_216 = arith.constant 0 : index
    %c0_217 = arith.constant 0 : index
    %508 = vector.load %arg12[%c1_215, %c0_216, %c0_217] : memref<2x2x32xf32, #tpu.memory_space<vmem>>, vector<1x2x32xf32>
    %509 = vector.shape_cast %508 : vector<1x2x32xf32> to vector<2x32xf32>
    %510 = vector.shape_cast %499 : vector<2x32xf32> to vector<1x2x32xf32>
    tpu.vector_store %arg12[%c1_215, %c0_216, %c0_217], %510 {strides = array<i32>} : memref<2x2x32xf32, #tpu.memory_space<vmem>>, vector<1x2x32xf32>,
    %c1_218 = arith.constant 1 : index
    %c0_219 = arith.constant 0 : index
    %c0_220 = arith.constant 0 : index
    %511 = vector.load %arg13[%c1_218, %c0_219, %c0_220] : memref<2x2x32xf32, #tpu.memory_space<vmem>>, vector<1x2x32xf32>
    %512 = vector.shape_cast %511 : vector<1x2x32xf32> to vector<2x32xf32>
    %513 = vector.shape_cast %497 : vector<2x32xf32> to vector<1x2x32xf32>
    tpu.vector_store %arg13[%c1_218, %c0_219, %c0_220], %513 {strides = array<i32>} : memref<2x2x32xf32, #tpu.memory_space<vmem>>, vector<1x2x32xf32>,
    %c0_221 = arith.constant 0 : index
    %c0_222 = arith.constant 0 : index
    %514 = vector.load %arg14[%c0_221, %c0_222] : memref<16x32xbf16, #tpu.memory_space<vmem>>, vector<16x32xbf16>
    %c0_223 = arith.constant 0 : index
    %c0_224 = arith.constant 0 : index
    %515 = vector.load %arg9[%c0_223, %c0_224] : memref<32x128xbf16, #tpu.memory_space<vmem>>, vector<32x128xbf16>
    %cst_225 = arith.constant dense<0.000000e+00> : vector<16x128xf32>
    %516 = tpu.matmul %514, %515, %cst_225 {dimension_numbers = #tpu.dot_dimension_numbers<[1], [0], [0], [1], [0, 0, 1, 1], [], []>} : vector<16x32xbf16>, vector<32x128xbf16>, vector<16x128xf32> -> vector<16x128xf32>
    %c0_226 = arith.constant 0 : index
    %c0_227 = arith.constant 0 : index
    %517 = vector.load %arg10[%c0_226, %c0_227] : memref<1x128xf32, #tpu.memory_space<vmem>>, vector<1x128xf32>
    %518 = vector.broadcast %517 : vector<1x128xf32> to vector<16x128xf32>
    %519 = arith.addf %516, %518 : vector<16x128xf32>
    %c0_228 = arith.constant 0 : index
    %c0_229 = arith.constant 0 : index
    %520 = vector.load %arg11[%c0_228, %c0_229] : memref<16x128xf32, #tpu.memory_space<vmem>>, vector<16x128xf32>
    tpu.vector_store %arg11[%c0_228, %c0_229], %519 {strides = array<i32>} : memref<16x128xf32, #tpu.memory_space<vmem>>, vector<16x128xf32>,
    return
  }
}

</mosaic_0001>

<llo_original>
// kernel: lstm_forward.1
$region0: #{lstm_forward.1}
  #allocation0 [shape = 'u32[]', space=smem, size = 0x4, offset = 0x4, fixed_abs, tag = 'smem constant byte address 0x4 - core index']
  #allocation1 [shape = 'u32[144,128]{1,0:T(1,128)}', space=vmem, size = 0x12000, scoped, tag = 'internal scratch']
  #allocation2 [shape = 'bf16[16,32]{1,0:T(16,128)(2,1)}', space=vmem, size = 0x1000, scoped, tag = 'scratch operand']
  %s0 = inlined_call_operand.vmem [shape: bf16[16,16], index: 0, kind: input, shape index: {}]
  %s1 = inlined_call_operand.vmem [shape: bf16[16,128], index: 1, kind: input, shape index: {}]
  %s2 = inlined_call_operand.vmem [shape: bf16[32,128], index: 2, kind: input, shape index: {}]
  %s3 = inlined_call_operand.vmem [shape: f32[1,128], index: 3, kind: input, shape index: {}]
  %s4 = inlined_call_operand.vmem [shape: bf16[32,128], index: 4, kind: input, shape index: {}]
  %s5 = inlined_call_operand.vmem [shape: bf16[32,128], index: 5, kind: input, shape index: {}]
  %s6 = inlined_call_operand.vmem [shape: f32[1,128], index: 6, kind: input, shape index: {}]
  %s7 = inlined_call_operand.vmem [shape: f32[2,2,32], index: 7, kind: input, shape index: {}]
  %s8 = inlined_call_operand.vmem [shape: f32[2,2,32], index: 8, kind: input, shape index: {}]
  %s9 = inlined_call_operand.vmem [shape: bf16[32,128], index: 9, kind: input, shape index: {}]
  %s10 = inlined_call_operand.vmem [shape: f32[1,128], index: 10, kind: input, shape index: {}]
  %s11 = inlined_call_operand.vmem [shape: f32[16,128], index: 11, kind: output, shape index: {0}]
  %s12 = inlined_call_operand.hbm [shape: f32[2,2,32], index: 12, kind: output, shape index: {1}]
  %s13 = inlined_call_operand.hbm [shape: f32[2,2,32], index: 13, kind: output, shape index: {2}]
  %14 = xla_tuple %s11, %s12, %s13
  %s15 = sld [smem:[#allocation0]]
  $region70: #{lstm_forward.1} parent=0
    _
  %s17 = ssub.s32 1, %s15
  %s18 = scalar_select 0, %s17, %s15
  $region1: #{lstm_forward.1} parent=0
    #allocation3 [shape = 'u8[2048]{0}', space=vmem, size = 0x800, scoped, tag = 'output window, operand 1, single buffered']
    #allocation4 [shape = 's32[1]{0}', space=sflag, size = 0x4, scoped, tag = 'scoped memory for lstm_forward.1']
    #allocation5 [shape = 'u8[2048]{0}', space=vmem, size = 0x800, scoped, tag = 'output window, operand 2, single buffered']
    #allocation6 [shape = 's32[1]{0}', space=sflag, size = 0x4, scoped, tag = 'scoped memory for lstm_forward.1']
    %19 = vsyncpa [#allocation4], 0
    %20 = vsyncpa [#allocation6], 0
    // Predicated region
    $region2: #{lstm_forward.1} parent=1 // pred_check
      _
    $region3: #{lstm_forward.1} parent=1 // pred_check_branch
      %22 = sbr.rel (0) target = $region5
    $region4: #{lstm_forward.1} parent=1 // pred_region
      _
    $region5: #{lstm_forward.1} parent=1 // pred_fallthru
      _
    // Predicated region
    $region6: #{lstm_forward.1} parent=1 // pred_check
      _
    $region7: #{lstm_forward.1} parent=1 // pred_check_branch
      %24 = sbr.rel (0) target = $region9
    $region8: #{lstm_forward.1} parent=1 // pred_region
      _
    $region9: #{lstm_forward.1} parent=1 // pred_fallthru
      _
    // Predicated region
    $region10: #{lstm_forward.1} parent=1 // pred_check
      _
    $region11: #{lstm_forward.1} parent=1 // pred_check_branch
      %26 = sbr.rel (0) target = $region13
    $region12: #{lstm_forward.1} parent=1 // pred_region
      _
    $region13: #{lstm_forward.1} parent=1 // pred_fallthru
      _
    // Predicated region
    $region14: #{lstm_forward.1} parent=1 // pred_check
      _
    $region15: #{lstm_forward.1} parent=1 // pred_check_branch
      %28 = sbr.rel (0) target = $region17
    $region16: #{lstm_forward.1} parent=1 // pred_region
      _
    $region17: #{lstm_forward.1} parent=1 // pred_fallthru
      _
    // Predicated region
    $region18: #{lstm_forward.1} parent=1 // pred_check
      _
    $region19: #{lstm_forward.1} parent=1 // pred_check_branch
      %30 = sbr.rel (0) target = $region21
    $region20: #{lstm_forward.1} parent=1 // pred_region
      _
    $region21: #{lstm_forward.1} parent=1 // pred_fallthru
      _
    // Predicated region
    $region22: #{lstm_forward.1} parent=1 // pred_check
      _
    $region23: #{lstm_forward.1} parent=1 // pred_check_branch
      %32 = sbr.rel (0) target = $region25
    $region24: #{lstm_forward.1} parent=1 // pred_region
      _
    $region25: #{lstm_forward.1} parent=1 // pred_fallthru
      _
    // Predicated region
    $region26: #{lstm_forward.1} parent=1 // pred_check
      _
    $region27: #{lstm_forward.1} parent=1 // pred_check_branch
      %34 = sbr.rel (0) target = $region29
    $region28: #{lstm_forward.1} parent=1 // pred_region
      _
    $region29: #{lstm_forward.1} parent=1 // pred_fallthru
      _
    // Predicated region
    $region30: #{lstm_forward.1} parent=1 // pred_check
      _
    $region31: #{lstm_forward.1} parent=1 // pred_check_branch
      %36 = sbr.rel (0) target = $region33
    $region32: #{lstm_forward.1} parent=1 // pred_region
      _
    $region33: #{lstm_forward.1} parent=1 // pred_fallthru
      _
    // Predicated region
    $region34: #{lstm_forward.1} parent=1 // pred_check
      _
    $region35: #{lstm_forward.1} parent=1 // pred_check_branch
      %38 = sbr.rel (0) target = $region37
    $region36: #{lstm_forward.1} parent=1 // pred_region
      _
    $region37: #{lstm_forward.1} parent=1 // pred_fallthru
      _
    // Predicated region
    $region38: #{lstm_forward.1} parent=1 // pred_check
      _
    $region39: #{lstm_forward.1} parent=1 // pred_check_branch
      %40 = sbr.rel (0) target = $region41
    $region40: #{lstm_forward.1} parent=1 // pred_region
      _
    $region41: #{lstm_forward.1} parent=1 // pred_fallthru
      _
    // Predicated region
    $region42: #{lstm_forward.1} parent=1 // pred_check
      _
    $region43: #{lstm_forward.1} parent=1 // pred_check_branch
      %42 = sbr.rel (0) target = $region45
    $region44: #{lstm_forward.1} parent=1 // pred_region
      _
    $region45: #{lstm_forward.1} parent=1 // pred_fallthru
      _
    %v44 = vld [vmem:[%s0] sm:$0xf]
    %v45 = vld [vmem:[%s0 + $0x4] sm:$0xf]
    %v46 = vld [vmem:[%s1] sm:$0xf]
    %v47 = vld [vmem:[%s1 + $0x4] sm:$0xf]
    %v48 = vld [vmem:[%s3] sm:$0x1]
    %v50 = vlaneseq
    %v51 = vshrl.u32 %v50, 7
    %v52 = vsub.s32 0, %v51
    %v53 = vrot.slane %v48, %v52
    %v57 = vunpack.c.l.b16 %v44
    %v58 = vunpack.c.l.b16 %v45
    %v59 = vpack.c.b16 %v58, %v57
    %v62 = vunpack.c.l.b16 %v46
    %v63 = vunpack.c.l.b16 %v47
    %v64 = vpack.c.b16 %v63, %v62
    %vm66 = vcmask 130048
    %v68 = vsel %vm66, %v59, 0
    %70 = vmatprep.subr.bf16.mxu0 0
    %71 = vmatpush1.bf16.msra.mxu0 %v64
    %72 = vmatprep.subr.bf16.mxu0 0
    %73 = vmatpush1.bf16.msra.mxu0 0
    %74 = vmatprep.subr.bf16.mxu0 0
    %75 = vmatpush1.bf16.msra.mxu0 0
    %76 = vmatprep.subr.bf16.mxu0 0
    %77 = vmatpush1.bf16.msra.mxu0 0
    %78 = vmatprep.subr.bf16.mxu0 0
    %79 = vmatpush1.bf16.msra.mxu0 0
    %80 = vmatprep.subr.bf16.mxu0 0
    %81 = vmatpush1.bf16.msra.mxu0 0
    %82 = vmatprep.subr.bf16.mxu0 0
    %83 = vmatpush1.bf16.msra.mxu0 0
    %84 = vmatprep.subr.bf16.mxu0 0
    %85 = vmatpush1.bf16.msra.mxu0 0
    %86 = vmatprep.subr.bf16.mxu0 0
    %87 = vmatpush1.bf16.msra.mxu0 0
    %88 = vmatprep.subr.bf16.mxu0 0
    %89 = vmatpush1.bf16.msra.mxu0 0
    %90 = vmatprep.subr.bf16.mxu0 0
    %91 = vmatpush1.bf16.msra.mxu0 0
    %92 = vmatprep.subr.bf16.mxu0 0
    %93 = vmatpush1.bf16.msra.mxu0 0
    %94 = vmatprep.subr.bf16.mxu0 0
    %95 = vmatpush1.bf16.msra.mxu0 0
    %96 = vmatprep.subr.bf16.mxu0 0
    %97 = vmatpush1.bf16.msra.mxu0 0
    %98 = vmatprep.subr.bf16.mxu0 0
    %99 = vmatpush1.bf16.msra.mxu0 0
    %100 = vmatprep.subr.bf16.mxu0 0
    %101 = vmatpush1.bf16.msra.mxu0 0
    %102 = vmatprep.mubr.bf16.mxu0 0
    %103 = vmatmul.mubr.bf16.gmra.mrb[0].mxu0 %v68
    %v104 = vpop.f32.mrb[0].mxu0
    %v105 = vadd.f32 %v53, %v104
    %v106 = vpop.f32.mrb[0].mxu0
    %v107 = vpop.f32.mrb[0].mxu0
    %v108 = vadd.f32 %v53, %v107
    %v109 = vpop.f32.mrb[0].mxu0
    %110 = vdwg.mxu0
    %v111 = vld [vmem:[%s7] sm:$0x3]
    %s112 = scalar_lea.vmem %s7, 2
    %v113 = vld [vmem:[%s112] sm:$0x3]
    %v114 = vld [vmem:[%s8] sm:$0x3]
    %s115 = scalar_lea.vmem %s8, 2
    %v116 = vld [vmem:[%s115] sm:$0x3]
    %v117 = vpack.c.bf16 %v111, %v111
    %v118 = vld [vmem:[%s2] sm:$0xf]
    %v119 = vld [vmem:[%s2 + $0x4] sm:$0xf]
    %v120 = vld [vmem:[%s2 + $0x8] sm:$0xf]
    %v121 = vld [vmem:[%s2 + $0xc] sm:$0xf]
    %v126 = vunpack.c.l.b16 %v118
    %v127 = vunpack.c.l.b16 %v119
    %v128 = vunpack.c.l.b16 %v120
    %v129 = vunpack.c.l.b16 %v121
    %v130 = vpack.c.b16 %v127, %v126
    %v131 = vpack.c.b16 %v129, %v128
    %vm134 = vcmask 261120
    %v136 = vsel %vm134, %v117, 0
    %138 = vmatprep.subr.bf16.mxu0 0
    %139 = vmatpush1.bf16.msra.mxu0 %v130
    %140 = vmatprep.subr.bf16.mxu0 0
    %141 = vmatpush1.bf16.msra.mxu0 %v131
    %142 = vmatprep.subr.bf16.mxu0 0
    %143 = vmatpush1.bf16.msra.mxu0 0
    %144 = vmatprep.subr.bf16.mxu0 0
    %145 = vmatpush1.bf16.msra.mxu0 0
    %146 = vmatprep.subr.bf16.mxu0 0
    %147 = vmatpush1.bf16.msra.mxu0 0
    %148 = vmatprep.subr.bf16.mxu0 0
    %149 = vmatpush1.bf16.msra.mxu0 0
    %150 = vmatprep.subr.bf16.mxu0 0
    %151 = vmatpush1.bf16.msra.mxu0 0
    %152 = vmatprep.subr.bf16.mxu0 0
    %153 = vmatpush1.bf16.msra.mxu0 0
    %154 = vmatprep.subr.bf16.mxu0 0
    %155 = vmatpush1.bf16.msra.mxu0 0
    %156 = vmatprep.subr.bf16.mxu0 0
    %157 = vmatpush1.bf16.msra.mxu0 0
    %158 = vmatprep.subr.bf16.mxu0 0
    %159 = vmatpush1.bf16.msra.mxu0 0
    %160 = vmatprep.subr.bf16.mxu0 0
    %161 = vmatpush1.bf16.msra.mxu0 0
    %162 = vmatprep.subr.bf16.mxu0 0
    %163 = vmatpush1.bf16.msra.mxu0 0
    %164 = vmatprep.subr.bf16.mxu0 0
    %165 = vmatpush1.bf16.msra.mxu0 0
    %166 = vmatprep.subr.bf16.mxu0 0
    %167 = vmatpush1.bf16.msra.mxu0 0
    %168 = vmatprep.subr.bf16.mxu0 0
    %169 = vmatpush1.bf16.msra.mxu0 0
    %170 = vmatprep.mubr.bf16.mxu0 0
    %171 = vmatmul.mubr.bf16.gmra.mrb[0].mxu0 %v136
    %v172 = vpop.f32.mrb[0].mxu0
    %v173 = vadd.f32 0.0, %v172
    %v174 = vpop.f32.mrb[0].mxu0
    %v175 = vpop.f32.mrb[0].mxu0
    %v176 = vpop.f32.mrb[0].mxu0
    %177 = vdwg.mxu0
    %v178 = vadd.f32 %v105, %v173
    %v179 = vtanh.pop %v178
    %v180 = vmul.f32 %v179, 0.5
    %v181 = vadd.f32 %v180, 0.5
    %183 = vrot.lane.b32.xlu0 %v114, 32
    %v184 = vpop.permute.xlu0 %183
    %v186 = vmul.f32 %v181, %v184
    %188 = vrot.lane.b32.xlu0 %v179, 64
    %v189 = vpop.permute.xlu0 %188
    %v191 = vmul.f32 %v181, %v189
    %193 = vrot.lane.b32.xlu0 %v191, 32
    %v194 = vpop.permute.xlu0 %193
    %v196 = vadd.f32 %v186, %v194
    %v197 = vtanh.pop %v196
    %199 = vrot.lane.b32.xlu0 %v197, 64
    %v200 = vpop.permute.xlu0 %199
    %v202 = vmul.f32 %v181, %v200
    %v203 = vpack.c.bf16 %v202, %v202
    %205 = vrot.lane.b32.xlu0 %v203, 32
    %v206 = vpop.permute.xlu0 %205
    %v208 = vsel %vm134, %v206, 0
    %210 = vmatprep.subr.bf16.mxu0 0
    %211 = vmatpush1.bf16.msra.mxu0 %v130
    %212 = vmatprep.subr.bf16.mxu0 0
    %213 = vmatpush1.bf16.msra.mxu0 %v131
    %214 = vmatprep.subr.bf16.mxu0 0
    %215 = vmatpush1.bf16.msra.mxu0 0
    %216 = vmatprep.subr.bf16.mxu0 0
    %217 = vmatpush1.bf16.msra.mxu0 0
    %218 = vmatprep.subr.bf16.mxu0 0
    %219 = vmatpush1.bf16.msra.mxu0 0
    %220 = vmatprep.subr.bf16.mxu0 0
    %221 = vmatpush1.bf16.msra.mxu0 0
    %222 = vmatprep.subr.bf16.mxu0 0
    %223 = vmatpush1.bf16.msra.mxu0 0
    %224 = vmatprep.subr.bf16.mxu0 0
    %225 = vmatpush1.bf16.msra.mxu0 0
    %226 = vmatprep.subr.bf16.mxu0 0
    %227 = vmatpush1.bf16.msra.mxu0 0
    %228 = vmatprep.subr.bf16.mxu0 0
    %229 = vmatpush1.bf16.msra.mxu0 0
    %230 = vmatprep.subr.bf16.mxu0 0
    %231 = vmatpush1.bf16.msra.mxu0 0
    %232 = vmatprep.subr.bf16.mxu0 0
    %233 = vmatpush1.bf16.msra.mxu0 0
    %234 = vmatprep.subr.bf16.mxu0 0
    %235 = vmatpush1.bf16.msra.mxu0 0
    %236 = vmatprep.subr.bf16.mxu0 0
    %237 = vmatpush1.bf16.msra.mxu0 0
    %238 = vmatprep.subr.bf16.mxu0 0
    %239 = vmatpush1.bf16.msra.mxu0 0
    %240 = vmatprep.subr.bf16.mxu0 0
    %241 = vmatpush1.bf16.msra.mxu0 0
    %242 = vmatprep.mubr.bf16.mxu0 0
    %243 = vmatmul.mubr.bf16.gmra.mrb[0].mxu0 %v208
    %v244 = vpop.f32.mrb[0].mxu0
    %v245 = vadd.f32 0.0, %v244
    %v246 = vpop.f32.mrb[0].mxu0
    %v247 = vpop.f32.mrb[0].mxu0
    %v248 = vpop.f32.mrb[0].mxu0
    %249 = vdwg.mxu0
    %v251 = vrot.slane %v245, 6
    %v253 = vadd.f32 %v105, %v251
    %v254 = vtanh.pop %v253
    %v255 = vmul.f32 %v254, 0.5
    %v256 = vadd.f32 %v255, 0.5
    %v258 = vrot.slane %v196, 6
    %v260 = vmul.f32 %v256, %v258
    %262 = vrot.lane.b32.xlu0 %v254, 64
    %v263 = vpop.permute.xlu0 %262
    %v265 = vmul.f32 %v256, %v263
    %267 = vrot.lane.b32.xlu0 %v265, 32
    %v268 = vpop.permute.xlu0 %267
    %v270 = vadd.f32 %v260, %v268
    %v271 = vtanh.pop %v270
    %273 = vrot.lane.b32.xlu0 %v271, 64
    %v274 = vpop.permute.xlu0 %273
    %v276 = vmul.f32 %v256, %v274
    %v277 = vld [vmem:[%s4] sm:$0xf]
    %v278 = vld [vmem:[%s4 + $0x4] sm:$0xf]
    %v279 = vld [vmem:[%s4 + $0x8] sm:$0xf]
    %v280 = vld [vmem:[%s4 + $0xc] sm:$0xf]
    %v281 = vpack.c.bf16 %v113, %v113
    %v282 = vld [vmem:[%s5] sm:$0xf]
    %v283 = vld [vmem:[%s5 + $0x4] sm:$0xf]
    %v284 = vld [vmem:[%s5 + $0x8] sm:$0xf]
    %v285 = vld [vmem:[%s5 + $0xc] sm:$0xf]
    %v290 = vunpack.c.l.b16 %v282
    %v291 = vunpack.c.l.b16 %v283
    %v292 = vunpack.c.l.b16 %v284
    %v293 = vunpack.c.l.b16 %v285
    %v294 = vpack.c.b16 %v291, %v290
    %v295 = vpack.c.b16 %v293, %v292
    %v299 = vsel %vm134, %v281, 0
    %301 = vmatprep.subr.bf16.mxu0 0
    %302 = vmatpush1.bf16.msra.mxu0 %v294
    %303 = vmatprep.subr.bf16.mxu0 0
    %304 = vmatpush1.bf16.msra.mxu0 %v295
    %305 = vmatprep.subr.bf16.mxu0 0
    %306 = vmatpush1.bf16.msra.mxu0 0
    %307 = vmatprep.subr.bf16.mxu0 0
    %308 = vmatpush1.bf16.msra.mxu0 0
    %309 = vmatprep.subr.bf16.mxu0 0
    %310 = vmatpush1.bf16.msra.mxu0 0
    %311 = vmatprep.subr.bf16.mxu0 0
    %312 = vmatpush1.bf16.msra.mxu0 0
    %313 = vmatprep.subr.bf16.mxu0 0
    %314 = vmatpush1.bf16.msra.mxu0 0
    %315 = vmatprep.subr.bf16.mxu0 0
    %316 = vmatpush1.bf16.msra.mxu0 0
    %317 = vmatprep.subr.bf16.mxu0 0
    %318 = vmatpush1.bf16.msra.mxu0 0
    %319 = vmatprep.subr.bf16.mxu0 0
    %320 = vmatpush1.bf16.msra.mxu0 0
    %321 = vmatprep.subr.bf16.mxu0 0
    %322 = vmatpush1.bf16.msra.mxu0 0
    %323 = vmatprep.subr.bf16.mxu0 0
    %324 = vmatpush1.bf16.msra.mxu0 0
    %325 = vmatprep.subr.bf16.mxu0 0
    %326 = vmatpush1.bf16.msra.mxu0 0
    %327 = vmatprep.subr.bf16.mxu0 0
    %328 = vmatpush1.bf16.msra.mxu0 0
    %329 = vmatprep.subr.bf16.mxu0 0
    %330 = vmatpush1.bf16.msra.mxu0 0
    %331 = vmatprep.subr.bf16.mxu0 0
    %332 = vmatpush1.bf16.msra.mxu0 0
    %333 = vmatprep.mubr.bf16.mxu0 0
    %334 = vmatmul.mubr.bf16.gmra.mrb[0].mxu0 %v299
    %v335 = vpop.f32.mrb[0].mxu0
    %v336 = vadd.f32 0.0, %v335
    %v337 = vpop.f32.mrb[0].mxu0
    %v338 = vpop.f32.mrb[0].mxu0
    %v339 = vpop.f32.mrb[0].mxu0
    %340 = vdwg.mxu0
    %v345 = vunpack.c.l.b16 %v277
    %v346 = vunpack.c.l.b16 %v278
    %v347 = vunpack.c.l.b16 %v279
    %v348 = vunpack.c.l.b16 %v280
    %v349 = vpack.c.b16 %v346, %v345
    %v350 = vpack.c.b16 %v348, %v347
    %353 = vmatprep.subr.bf16.mxu0 0
    %354 = vmatpush1.bf16.msra.mxu0 %v349
    %355 = vmatprep.subr.bf16.mxu0 0
    %356 = vmatpush1.bf16.msra.mxu0 %v350
    %357 = vmatprep.subr.bf16.mxu0 0
    %358 = vmatpush1.bf16.msra.mxu0 0
    %359 = vmatprep.subr.bf16.mxu0 0
    %360 = vmatpush1.bf16.msra.mxu0 0
    %361 = vmatprep.subr.bf16.mxu0 0
    %362 = vmatpush1.bf16.msra.mxu0 0
    %363 = vmatprep.subr.bf16.mxu0 0
    %364 = vmatpush1.bf16.msra.mxu0 0
    %365 = vmatprep.subr.bf16.mxu0 0
    %366 = vmatpush1.bf16.msra.mxu0 0
    %367 = vmatprep.subr.bf16.mxu0 0
    %368 = vmatpush1.bf16.msra.mxu0 0
    %369 = vmatprep.subr.bf16.mxu0 0
    %370 = vmatpush1.bf16.msra.mxu0 0
    %371 = vmatprep.subr.bf16.mxu0 0
    %372 = vmatpush1.bf16.msra.mxu0 0
    %373 = vmatprep.subr.bf16.mxu0 0
    %374 = vmatpush1.bf16.msra.mxu0 0
    %375 = vmatprep.subr.bf16.mxu0 0
    %376 = vmatpush1.bf16.msra.mxu0 0
    %377 = vmatprep.subr.bf16.mxu0 0
    %378 = vmatpush1.bf16.msra.mxu0 0
    %379 = vmatprep.subr.bf16.mxu0 0
    %380 = vmatpush1.bf16.msra.mxu0 0
    %381 = vmatprep.subr.bf16.mxu0 0
    %382 = vmatpush1.bf16.msra.mxu0 0
    %383 = vmatprep.subr.bf16.mxu0 0
    %384 = vmatpush1.bf16.msra.mxu0 0
    %385 = vmatprep.mubr.bf16.mxu0 0
    %386 = vmatmul.mubr.bf16.gmra.mrb[0].mxu0 %v208
    %v387 = vpop.f32.mrb[0].mxu0
    %v388 = vadd.f32 %v336, %v387
    %v389 = vpop.f32.mrb[0].mxu0
    %v390 = vpop.f32.mrb[0].mxu0
    %v391 = vpop.f32.mrb[0].mxu0
    %392 = vdwg.mxu0
    %v393 = vld [vmem:[%s6] sm:$0x1]
    %v395 = vlaneseq
    %v396 = vshrl.u32 %v395, 7
    %v397 = vsub.s32 0, %v396
    %v398 = vrot.slane %v393, %v397
    %v400 = vadd.f32 %v388, %v398
    %v401 = vtanh.pop %v400
    %v402 = vmul.f32 %v401, 0.5
    %v403 = vadd.f32 %v402, 0.5
    %405 = vrot.lane.b32.xlu0 %v116, 32
    %v406 = vpop.permute.xlu0 %405
    %v408 = vmul.f32 %v403, %v406
    %410 = vrot.lane.b32.xlu0 %v401, 64
    %v411 = vpop.permute.xlu0 %410
    %v413 = vmul.f32 %v403, %v411
    %415 = vrot.lane.b32.xlu0 %v413, 32
    %v416 = vpop.permute.xlu0 %415
    %v418 = vadd.f32 %v408, %v416
    %v419 = vtanh.pop %v418
    %421 = vrot.lane.b32.xlu0 %v419, 64
    %v422 = vpop.permute.xlu0 %421
    %v424 = vmul.f32 %v403, %v422
    %v425 = vpack.c.bf16 %v424, %v424
    %427 = vrot.lane.b32.xlu0 %v425, 32
    %v428 = vpop.permute.xlu0 %427
    %vm430 = vcmask 253952
    %431 = vst.msk [vmem:[#allocation2] sm:$0x1] %vm430, %v428
    %v432 = vpack.c.bf16 %v276, %v276
    %v433 = vld [vmem:[%s2] sm:$0xf]
    %v434 = vld [vmem:[%s2 + $0x4] sm:$0xf]
    %v435 = vld [vmem:[%s2 + $0x8] sm:$0xf]
    %v436 = vld [vmem:[%s2 + $0xc] sm:$0xf]
    %v438 = vrot.slane %v432, 1
    %439 = vrot.lane.b32.xlu0 %v438, 32
    %v440 = vpop.permute.xlu0 %439
    %v445 = vunpack.c.l.b16 %v433
    %v446 = vunpack.c.l.b16 %v434
    %v447 = vunpack.c.l.b16 %v435
    %v448 = vunpack.c.l.b16 %v436
    %v449 = vpack.c.b16 %v446, %v445
    %v450 = vpack.c.b16 %v448, %v447
    %v454 = vsel %vm134, %v440, 0
    %456 = vmatprep.subr.bf16.mxu0 0
    %457 = vmatpush1.bf16.msra.mxu0 %v449
    %458 = vmatprep.subr.bf16.mxu0 0
    %459 = vmatpush1.bf16.msra.mxu0 %v450
    %460 = vmatprep.subr.bf16.mxu0 0
    %461 = vmatpush1.bf16.msra.mxu0 0
    %462 = vmatprep.subr.bf16.mxu0 0
    %463 = vmatpush1.bf16.msra.mxu0 0
    %464 = vmatprep.subr.bf16.mxu0 0
    %465 = vmatpush1.bf16.msra.mxu0 0
    %466 = vmatprep.subr.bf16.mxu0 0
    %467 = vmatpush1.bf16.msra.mxu0 0
    %468 = vmatprep.subr.bf16.mxu0 0
    %469 = vmatpush1.bf16.msra.mxu0 0
    %470 = vmatprep.subr.bf16.mxu0 0
    %471 = vmatpush1.bf16.msra.mxu0 0
    %472 = vmatprep.subr.bf16.mxu0 0
    %473 = vmatpush1.bf16.msra.mxu0 0
    %474 = vmatprep.subr.bf16.mxu0 0
    %475 = vmatpush1.bf16.msra.mxu0 0
    %476 = vmatprep.subr.bf16.mxu0 0
    %477 = vmatpush1.bf16.msra.mxu0 0
    %478 = vmatprep.subr.bf16.mxu0 0
    %479 = vmatpush1.bf16.msra.mxu0 0
    %480 = vmatprep.subr.bf16.mxu0 0
    %481 = vmatpush1.bf16.msra.mxu0 0
    %482 = vmatprep.subr.bf16.mxu0 0
    %483 = vmatpush1.bf16.msra.mxu0 0
    %484 = vmatprep.subr.bf16.mxu0 0
    %485 = vmatpush1.bf16.msra.mxu0 0
    %486 = vmatprep.subr.bf16.mxu0 0
    %487 = vmatpush1.bf16.msra.mxu0 0
    %488 = vmatprep.mubr.bf16.mxu0 0
    %489 = vmatmul.mubr.bf16.gmra.mrb[0].mxu0 %v454
    %v490 = vpop.f32.mrb[0].mxu0
    %v491 = vadd.f32 0.0, %v490
    %v492 = vpop.f32.mrb[0].mxu0
    %v493 = vpop.f32.mrb[0].mxu0
    %v494 = vpop.f32.mrb[0].mxu0
    %495 = vdwg.mxu0
    %v497 = vrot.slane %v491, 4
    %v499 = vadd.f32 %v105, %v497
    %v500 = vtanh.pop %v499
    %v501 = vmul.f32 %v500, 0.5
    %v502 = vadd.f32 %v501, 0.5
    %v504 = vrot.slane %v270, 6
    %v506 = vmul.f32 %v502, %v504
    %508 = vrot.lane.b32.xlu0 %v500, 64
    %v509 = vpop.permute.xlu0 %508
    %v511 = vmul.f32 %v502, %v509
    %513 = vrot.lane.b32.xlu0 %v511, 32
    %v514 = vpop.permute.xlu0 %513
    %v516 = vadd.f32 %v506, %v514
    %v517 = vtanh.pop %v516
    %519 = vrot.lane.b32.xlu0 %v517, 64
    %v520 = vpop.permute.xlu0 %519
    %v522 = vmul.f32 %v502, %v520
    %v523 = vld [vmem:[%s4] sm:$0xf]
    %v524 = vld [vmem:[%s4 + $0x4] sm:$0xf]
    %v525 = vld [vmem:[%s4 + $0x8] sm:$0xf]
    %v526 = vld [vmem:[%s4 + $0xc] sm:$0xf]
    %v527 = vld [vmem:[%s5] sm:$0xf]
    %v528 = vld [vmem:[%s5 + $0x4] sm:$0xf]
    %v529 = vld [vmem:[%s5 + $0x8] sm:$0xf]
    %v530 = vld [vmem:[%s5 + $0xc] sm:$0xf]
    %v535 = vunpack.c.l.b16 %v527
    %v536 = vunpack.c.l.b16 %v528
    %v537 = vunpack.c.l.b16 %v529
    %v538 = vunpack.c.l.b16 %v530
    %v539 = vpack.c.b16 %v536, %v535
    %v540 = vpack.c.b16 %v538, %v537
    %v544 = vsel %vm134, %v428, 0
    %546 = vmatprep.subr.bf16.mxu0 0
    %547 = vmatpush1.bf16.msra.mxu0 %v539
    %548 = vmatprep.subr.bf16.mxu0 0
    %549 = vmatpush1.bf16.msra.mxu0 %v540
    %550 = vmatprep.subr.bf16.mxu0 0
    %551 = vmatpush1.bf16.msra.mxu0 0
    %552 = vmatprep.subr.bf16.mxu0 0
    %553 = vmatpush1.bf16.msra.mxu0 0
    %554 = vmatprep.subr.bf16.mxu0 0
    %555 = vmatpush1.bf16.msra.mxu0 0
    %556 = vmatprep.subr.bf16.mxu0 0
    %557 = vmatpush1.bf16.msra.mxu0 0
    %558 = vmatprep.subr.bf16.mxu0 0
    %559 = vmatpush1.bf16.msra.mxu0 0
    %560 = vmatprep.subr.bf16.mxu0 0
    %561 = vmatpush1.bf16.msra.mxu0 0
    %562 = vmatprep.subr.bf16.mxu0 0
    %563 = vmatpush1.bf16.msra.mxu0 0
    %564 = vmatprep.subr.bf16.mxu0 0
    %565 = vmatpush1.bf16.msra.mxu0 0
    %566 = vmatprep.subr.bf16.mxu0 0
    %567 = vmatpush1.bf16.msra.mxu0 0
    %568 = vmatprep.subr.bf16.mxu0 0
    %569 = vmatpush1.bf16.msra.mxu0 0
    %570 = vmatprep.subr.bf16.mxu0 0
    %571 = vmatpush1.bf16.msra.mxu0 0
    %572 = vmatprep.subr.bf16.mxu0 0
    %573 = vmatpush1.bf16.msra.mxu0 0
    %574 = vmatprep.subr.bf16.mxu0 0
    %575 = vmatpush1.bf16.msra.mxu0 0
    %576 = vmatprep.subr.bf16.mxu0 0
    %577 = vmatpush1.bf16.msra.mxu0 0
    %578 = vmatprep.mubr.bf16.mxu0 0
    %579 = vmatmul.mubr.bf16.gmra.mrb[0].mxu0 %v544
    %v580 = vpop.f32.mrb[0].mxu0
    %v581 = vadd.f32 0.0, %v580
    %v582 = vpop.f32.mrb[0].mxu0
    %v583 = vpop.f32.mrb[0].mxu0
    %v584 = vpop.f32.mrb[0].mxu0
    %585 = vdwg.mxu0
    %v590 = vunpack.c.l.b16 %v523
    %v591 = vunpack.c.l.b16 %v524
    %v592 = vunpack.c.l.b16 %v525
    %v593 = vunpack.c.l.b16 %v526
    %v594 = vpack.c.b16 %v591, %v590
    %v595 = vpack.c.b16 %v593, %v592
    %598 = vmatprep.subr.bf16.mxu0 0
    %599 = vmatpush1.bf16.msra.mxu0 %v594
    %600 = vmatprep.subr.bf16.mxu0 0
    %601 = vmatpush1.bf16.msra.mxu0 %v595
    %602 = vmatprep.subr.bf16.mxu0 0
    %603 = vmatpush1.bf16.msra.mxu0 0
    %604 = vmatprep.subr.bf16.mxu0 0
    %605 = vmatpush1.bf16.msra.mxu0 0
    %606 = vmatprep.subr.bf16.mxu0 0
    %607 = vmatpush1.bf16.msra.mxu0 0
    %608 = vmatprep.subr.bf16.mxu0 0
    %609 = vmatpush1.bf16.msra.mxu0 0
    %610 = vmatprep.subr.bf16.mxu0 0
    %611 = vmatpush1.bf16.msra.mxu0 0
    %612 = vmatprep.subr.bf16.mxu0 0
    %613 = vmatpush1.bf16.msra.mxu0 0
    %614 = vmatprep.subr.bf16.mxu0 0
    %615 = vmatpush1.bf16.msra.mxu0 0
    %616 = vmatprep.subr.bf16.mxu0 0
    %617 = vmatpush1.bf16.msra.mxu0 0
    %618 = vmatprep.subr.bf16.mxu0 0
    %619 = vmatpush1.bf16.msra.mxu0 0
    %620 = vmatprep.subr.bf16.mxu0 0
    %621 = vmatpush1.bf16.msra.mxu0 0
    %622 = vmatprep.subr.bf16.mxu0 0
    %623 = vmatpush1.bf16.msra.mxu0 0
    %624 = vmatprep.subr.bf16.mxu0 0
    %625 = vmatpush1.bf16.msra.mxu0 0
    %626 = vmatprep.subr.bf16.mxu0 0
    %627 = vmatpush1.bf16.msra.mxu0 0
    %628 = vmatprep.subr.bf16.mxu0 0
    %629 = vmatpush1.bf16.msra.mxu0 0
    %630 = vmatprep.mubr.bf16.mxu0 0
    %631 = vmatmul.mubr.bf16.gmra.mrb[0].mxu0 %v454
    %v632 = vpop.f32.mrb[0].mxu0
    %v633 = vadd.f32 %v581, %v632
    %v634 = vpop.f32.mrb[0].mxu0
    %v635 = vpop.f32.mrb[0].mxu0
    %v636 = vpop.f32.mrb[0].mxu0
    %637 = vdwg.mxu0
    %v638 = vld [vmem:[%s6] sm:$0x1]
    %v640 = vlaneseq
    %v641 = vshrl.u32 %v640, 7
    %v642 = vsub.s32 0, %v641
    %v643 = vrot.slane %v638, %v642
    %v645 = vadd.f32 %v633, %v643
    %v646 = vtanh.pop %v645
    %v647 = vmul.f32 %v646, 0.5
    %v648 = vadd.f32 %v647, 0.5
    %v649 = vmul.f32 %v648, %v418
    %651 = vrot.lane.b32.xlu0 %v646, 64
    %v652 = vpop.permute.xlu0 %651
    %v654 = vmul.f32 %v648, %v652
    %656 = vrot.lane.b32.xlu0 %v654, 32
    %v657 = vpop.permute.xlu0 %656
    %v659 = vadd.f32 %v649, %v657
    %v660 = vtanh.pop %v659
    %662 = vrot.lane.b32.xlu0 %v660, 64
    %v663 = vpop.permute.xlu0 %662
    %v665 = vmul.f32 %v648, %v663
    %v666 = vpack.c.bf16 %v665, %v665
    %v668 = vrot.slane %v666, 7
    %669 = vrot.lane.b32.xlu0 %v668, 32
    %v670 = vpop.permute.xlu0 %669
    %vm672 = vcmask 254977
    %673 = vst.msk [vmem:[#allocation2] sm:$0x2] %vm672, %v670
    %v674 = vpack.c.bf16 %v522, %v522
    %v675 = vld [vmem:[%s2] sm:$0xf]
    %v676 = vld [vmem:[%s2 + $0x4] sm:$0xf]
    %v677 = vld [vmem:[%s2 + $0x8] sm:$0xf]
    %v678 = vld [vmem:[%s2 + $0xc] sm:$0xf]
    %v680 = vrot.slane %v674, 2
    %681 = vrot.lane.b32.xlu0 %v680, 32
    %v682 = vpop.permute.xlu0 %681
    %v687 = vunpack.c.l.b16 %v675
    %v688 = vunpack.c.l.b16 %v676
    %v689 = vunpack.c.l.b16 %v677
    %v690 = vunpack.c.l.b16 %v678
    %v691 = vpack.c.b16 %v688, %v687
    %v692 = vpack.c.b16 %v690, %v689
    %v696 = vsel %vm134, %v682, 0
    %698 = vmatprep.subr.bf16.mxu0 0
    %699 = vmatpush1.bf16.msra.mxu0 %v691
    %700 = vmatprep.subr.bf16.mxu0 0
    %701 = vmatpush1.bf16.msra.mxu0 %v692
    %702 = vmatprep.subr.bf16.mxu0 0
    %703 = vmatpush1.bf16.msra.mxu0 0
    %704 = vmatprep.subr.bf16.mxu0 0
    %705 = vmatpush1.bf16.msra.mxu0 0
    %706 = vmatprep.subr.bf16.mxu0 0
    %707 = vmatpush1.bf16.msra.mxu0 0
    %708 = vmatprep.subr.bf16.mxu0 0
    %709 = vmatpush1.bf16.msra.mxu0 0
    %710 = vmatprep.subr.bf16.mxu0 0
    %711 = vmatpush1.bf16.msra.mxu0 0
    %712 = vmatprep.subr.bf16.mxu0 0
    %713 = vmatpush1.bf16.msra.mxu0 0
    %714 = vmatprep.subr.bf16.mxu0 0
    %715 = vmatpush1.bf16.msra.mxu0 0
    %716 = vmatprep.subr.bf16.mxu0 0
    %717 = vmatpush1.bf16.msra.mxu0 0
    %718 = vmatprep.subr.bf16.mxu0 0
    %719 = vmatpush1.bf16.msra.mxu0 0
    %720 = vmatprep.subr.bf16.mxu0 0
    %721 = vmatpush1.bf16.msra.mxu0 0
    %722 = vmatprep.subr.bf16.mxu0 0
    %723 = vmatpush1.bf16.msra.mxu0 0
    %724 = vmatprep.subr.bf16.mxu0 0
    %725 = vmatpush1.bf16.msra.mxu0 0
    %726 = vmatprep.subr.bf16.mxu0 0
    %727 = vmatpush1.bf16.msra.mxu0 0
    %728 = vmatprep.subr.bf16.mxu0 0
    %729 = vmatpush1.bf16.msra.mxu0 0
    %730 = vmatprep.mubr.bf16.mxu0 0
    %731 = vmatmul.mubr.bf16.gmra.mrb[0].mxu0 %v696
    %v732 = vpop.f32.mrb[0].mxu0
    %v733 = vadd.f32 0.0, %v732
    %v734 = vpop.f32.mrb[0].mxu0
    %v735 = vpop.f32.mrb[0].mxu0
    %v736 = vpop.f32.mrb[0].mxu0
    %737 = vdwg.mxu0
    %v739 = vrot.slane %v733, 2
    %v741 = vadd.f32 %v105, %v739
    %v742 = vtanh.pop %v741
    %v743 = vmul.f32 %v742, 0.5
    %v744 = vadd.f32 %v743, 0.5
    %v746 = vrot.slane %v516, 6
    %v748 = vmul.f32 %v744, %v746
    %750 = vrot.lane.b32.xlu0 %v742, 64
    %v751 = vpop.permute.xlu0 %750
    %v753 = vmul.f32 %v744, %v751
    %755 = vrot.lane.b32.xlu0 %v753, 32
    %v756 = vpop.permute.xlu0 %755
    %v758 = vadd.f32 %v748, %v756
    %v759 = vtanh.pop %v758
    %761 = vrot.lane.b32.xlu0 %v759, 64
    %v762 = vpop.permute.xlu0 %761
    %v764 = vmul.f32 %v744, %v762
    %v765 = vld [vmem:[%s4] sm:$0xf]
    %v766 = vld [vmem:[%s4 + $0x4] sm:$0xf]
    %v767 = vld [vmem:[%s4 + $0x8] sm:$0xf]
    %v768 = vld [vmem:[%s4 + $0xc] sm:$0xf]
    %v769 = vld [vmem:[%s5] sm:$0xf]
    %v770 = vld [vmem:[%s5 + $0x4] sm:$0xf]
    %v771 = vld [vmem:[%s5 + $0x8] sm:$0xf]
    %v772 = vld [vmem:[%s5 + $0xc] sm:$0xf]
    %773 = vrot.lane.b32.xlu0 %v666, 32
    %v774 = vpop.permute.xlu0 %773
    %v779 = vunpack.c.l.b16 %v769
    %v780 = vunpack.c.l.b16 %v770
    %v781 = vunpack.c.l.b16 %v771
    %v782 = vunpack.c.l.b16 %v772
    %v783 = vpack.c.b16 %v780, %v779
    %v784 = vpack.c.b16 %v782, %v781
    %v788 = vsel %vm134, %v774, 0
    %790 = vmatprep.subr.bf16.mxu0 0
    %791 = vmatpush1.bf16.msra.mxu0 %v783
    %792 = vmatprep.subr.bf16.mxu0 0
    %793 = vmatpush1.bf16.msra.mxu0 %v784
    %794 = vmatprep.subr.bf16.mxu0 0
    %795 = vmatpush1.bf16.msra.mxu0 0
    %796 = vmatprep.subr.bf16.mxu0 0
    %797 = vmatpush1.bf16.msra.mxu0 0
    %798 = vmatprep.subr.bf16.mxu0 0
    %799 = vmatpush1.bf16.msra.mxu0 0
    %800 = vmatprep.subr.bf16.mxu0 0
    %801 = vmatpush1.bf16.msra.mxu0 0
    %802 = vmatprep.subr.bf16.mxu0 0
    %803 = vmatpush1.bf16.msra.mxu0 0
    %804 = vmatprep.subr.bf16.mxu0 0
    %805 = vmatpush1.bf16.msra.mxu0 0
    %806 = vmatprep.subr.bf16.mxu0 0
    %807 = vmatpush1.bf16.msra.mxu0 0
    %808 = vmatprep.subr.bf16.mxu0 0
    %809 = vmatpush1.bf16.msra.mxu0 0
    %810 = vmatprep.subr.bf16.mxu0 0
    %811 = vmatpush1.bf16.msra.mxu0 0
    %812 = vmatprep.subr.bf16.mxu0 0
    %813 = vmatpush1.bf16.msra.mxu0 0
    %814 = vmatprep.subr.bf16.mxu0 0
    %815 = vmatpush1.bf16.msra.mxu0 0
    %816 = vmatprep.subr.bf16.mxu0 0
    %817 = vmatpush1.bf16.msra.mxu0 0
    %818 = vmatprep.subr.bf16.mxu0 0
    %819 = vmatpush1.bf16.msra.mxu0 0
    %820 = vmatprep.subr.bf16.mxu0 0
    %821 = vmatpush1.bf16.msra.mxu0 0
    %822 = vmatprep.mubr.bf16.mxu0 0
    %823 = vmatmul.mubr.bf16.gmra.mrb[0].mxu0 %v788
    %v824 = vpop.f32.mrb[0].mxu0
    %v825 = vadd.f32 0.0, %v824
    %v826 = vpop.f32.mrb[0].mxu0
    %v827 = vpop.f32.mrb[0].mxu0
    %v828 = vpop.f32.mrb[0].mxu0
    %829 = vdwg.mxu0
    %v834 = vunpack.c.l.b16 %v765
    %v835 = vunpack.c.l.b16 %v766
    %v836 = vunpack.c.l.b16 %v767
    %v837 = vunpack.c.l.b16 %v768
    %v838 = vpack.c.b16 %v835, %v834
    %v839 = vpack.c.b16 %v837, %v836
    %842 = vmatprep.subr.bf16.mxu0 0
    %843 = vmatpush1.bf16.msra.mxu0 %v838
    %844 = vmatprep.subr.bf16.mxu0 0
    %845 = vmatpush1.bf16.msra.mxu0 %v839
    %846 = vmatprep.subr.bf16.mxu0 0
    %847 = vmatpush1.bf16.msra.mxu0 0
    %848 = vmatprep.subr.bf16.mxu0 0
    %849 = vmatpush1.bf16.msra.mxu0 0
    %850 = vmatprep.subr.bf16.mxu0 0
    %851 = vmatpush1.bf16.msra.mxu0 0
    %852 = vmatprep.subr.bf16.mxu0 0
    %853 = vmatpush1.bf16.msra.mxu0 0
    %854 = vmatprep.subr.bf16.mxu0 0
    %855 = vmatpush1.bf16.msra.mxu0 0
    %856 = vmatprep.subr.bf16.mxu0 0
    %857 = vmatpush1.bf16.msra.mxu0 0
    %858 = vmatprep.subr.bf16.mxu0 0
    %859 = vmatpush1.bf16.msra.mxu0 0
    %860 = vmatprep.subr.bf16.mxu0 0
    %861 = vmatpush1.bf16.msra.mxu0 0
    %862 = vmatprep.subr.bf16.mxu0 0
    %863 = vmatpush1.bf16.msra.mxu0 0
    %864 = vmatprep.subr.bf16.mxu0 0
    %865 = vmatpush1.bf16.msra.mxu0 0
    %866 = vmatprep.subr.bf16.mxu0 0
    %867 = vmatpush1.bf16.msra.mxu0 0
    %868 = vmatprep.subr.bf16.mxu0 0
    %869 = vmatpush1.bf16.msra.mxu0 0
    %870 = vmatprep.subr.bf16.mxu0 0
    %871 = vmatpush1.bf16.msra.mxu0 0
    %872 = vmatprep.subr.bf16.mxu0 0
    %873 = vmatpush1.bf16.msra.mxu0 0
    %874 = vmatprep.mubr.bf16.mxu0 0
    %875 = vmatmul.mubr.bf16.gmra.mrb[0].mxu0 %v696
    %v876 = vpop.f32.mrb[0].mxu0
    %v877 = vadd.f32 %v825, %v876
    %v878 = vpop.f32.mrb[0].mxu0
    %v879 = vpop.f32.mrb[0].mxu0
    %v880 = vpop.f32.mrb[0].mxu0
    %881 = vdwg.mxu0
    %v882 = vld [vmem:[%s6] sm:$0x1]
    %v884 = vlaneseq
    %v885 = vshrl.u32 %v884, 7
    %v886 = vsub.s32 0, %v885
    %v887 = vrot.slane %v882, %v886
    %v889 = vadd.f32 %v877, %v887
    %v890 = vtanh.pop %v889
    %v891 = vmul.f32 %v890, 0.5
    %v892 = vadd.f32 %v891, 0.5
    %v893 = vmul.f32 %v892, %v659
    %895 = vrot.lane.b32.xlu0 %v890, 64
    %v896 = vpop.permute.xlu0 %895
    %v898 = vmul.f32 %v892, %v896
    %900 = vrot.lane.b32.xlu0 %v898, 32
    %v901 = vpop.permute.xlu0 %900
    %v903 = vadd.f32 %v893, %v901
    %v904 = vtanh.pop %v903
    %906 = vrot.lane.b32.xlu0 %v904, 64
    %v907 = vpop.permute.xlu0 %906
    %v909 = vmul.f32 %v892, %v907
    %v910 = vpack.c.bf16 %v909, %v909
    %v912 = vrot.slane %v910, 6
    %913 = vrot.lane.b32.xlu0 %v912, 32
    %v914 = vpop.permute.xlu0 %913
    %vm916 = vcmask 256002
    %917 = vst.msk [vmem:[#allocation2] sm:$0x4] %vm916, %v914
    %v918 = vpack.c.bf16 %v764, %v764
    %v919 = vld [vmem:[%s2] sm:$0xf]
    %v920 = vld [vmem:[%s2 + $0x4] sm:$0xf]
    %v921 = vld [vmem:[%s2 + $0x8] sm:$0xf]
    %v922 = vld [vmem:[%s2 + $0xc] sm:$0xf]
    %v924 = vrot.slane %v918, 3
    %925 = vrot.lane.b32.xlu0 %v924, 32
    %v926 = vpop.permute.xlu0 %925
    %v931 = vunpack.c.l.b16 %v919
    %v932 = vunpack.c.l.b16 %v920
    %v933 = vunpack.c.l.b16 %v921
    %v934 = vunpack.c.l.b16 %v922
    %v935 = vpack.c.b16 %v932, %v931
    %v936 = vpack.c.b16 %v934, %v933
    %v940 = vsel %vm134, %v926, 0
    %942 = vmatprep.subr.bf16.mxu0 0
    %943 = vmatpush1.bf16.msra.mxu0 %v935
    %944 = vmatprep.subr.bf16.mxu0 0
    %945 = vmatpush1.bf16.msra.mxu0 %v936
    %946 = vmatprep.subr.bf16.mxu0 0
    %947 = vmatpush1.bf16.msra.mxu0 0
    %948 = vmatprep.subr.bf16.mxu0 0
    %949 = vmatpush1.bf16.msra.mxu0 0
    %950 = vmatprep.subr.bf16.mxu0 0
    %951 = vmatpush1.bf16.msra.mxu0 0
    %952 = vmatprep.subr.bf16.mxu0 0
    %953 = vmatpush1.bf16.msra.mxu0 0
    %954 = vmatprep.subr.bf16.mxu0 0
    %955 = vmatpush1.bf16.msra.mxu0 0
    %956 = vmatprep.subr.bf16.mxu0 0
    %957 = vmatpush1.bf16.msra.mxu0 0
    %958 = vmatprep.subr.bf16.mxu0 0
    %959 = vmatpush1.bf16.msra.mxu0 0
    %960 = vmatprep.subr.bf16.mxu0 0
    %961 = vmatpush1.bf16.msra.mxu0 0
    %962 = vmatprep.subr.bf16.mxu0 0
    %963 = vmatpush1.bf16.msra.mxu0 0
    %964 = vmatprep.subr.bf16.mxu0 0
    %965 = vmatpush1.bf16.msra.mxu0 0
    %966 = vmatprep.subr.bf16.mxu0 0
    %967 = vmatpush1.bf16.msra.mxu0 0
    %968 = vmatprep.subr.bf16.mxu0 0
    %969 = vmatpush1.bf16.msra.mxu0 0
    %970 = vmatprep.subr.bf16.mxu0 0
    %971 = vmatpush1.bf16.msra.mxu0 0
    %972 = vmatprep.subr.bf16.mxu0 0
    %973 = vmatpush1.bf16.msra.mxu0 0
    %974 = vmatprep.mubr.bf16.mxu0 0
    %975 = vmatmul.mubr.bf16.gmra.mrb[0].mxu0 %v940
    %v976 = vpop.f32.mrb[0].mxu0
    %v977 = vadd.f32 0.0, %v976
    %v978 = vpop.f32.mrb[0].mxu0
    %v979 = vpop.f32.mrb[0].mxu0
    %v980 = vpop.f32.mrb[0].mxu0
    %981 = vdwg.mxu0
    %v982 = vadd.f32 %v108, %v977
    %v983 = vtanh.pop %v982
    %v984 = vmul.f32 %v983, 0.5
    %v985 = vadd.f32 %v984, 0.5
    %v987 = vrot.slane %v758, 6
    %v989 = vmul.f32 %v985, %v987
    %991 = vrot.lane.b32.xlu0 %v983, 64
    %v992 = vpop.permute.xlu0 %991
    %v994 = vmul.f32 %v985, %v992
    %996 = vrot.lane.b32.xlu0 %v994, 32
    %v997 = vpop.permute.xlu0 %996
    %v999 = vadd.f32 %v989, %v997
    %v1000 = vtanh.pop %v999
    %1002 = vrot.lane.b32.xlu0 %v1000, 64
    %v1003 = vpop.permute.xlu0 %1002
    %v1005 = vmul.f32 %v985, %v1003
    %v1006 = vld [vmem:[%s4] sm:$0xf]
    %v1007 = vld [vmem:[%s4 + $0x4] sm:$0xf]
    %v1008 = vld [vmem:[%s4 + $0x8] sm:$0xf]
    %v1009 = vld [vmem:[%s4 + $0xc] sm:$0xf]
    %v1010 = vld [vmem:[%s5] sm:$0xf]
    %v1011 = vld [vmem:[%s5 + $0x4] sm:$0xf]
    %v1012 = vld [vmem:[%s5 + $0x8] sm:$0xf]
    %v1013 = vld [vmem:[%s5 + $0xc] sm:$0xf]
    %1014 = vrot.lane.b32.xlu0 %v910, 32
    %v1015 = vpop.permute.xlu0 %1014
    %v1020 = vunpack.c.l.b16 %v1010
    %v1021 = vunpack.c.l.b16 %v1011
    %v1022 = vunpack.c.l.b16 %v1012
    %v1023 = vunpack.c.l.b16 %v1013
    %v1024 = vpack.c.b16 %v1021, %v1020
    %v1025 = vpack.c.b16 %v1023, %v1022
    %v1029 = vsel %vm134, %v1015, 0
    %1031 = vmatprep.subr.bf16.mxu0 0
    %1032 = vmatpush1.bf16.msra.mxu0 %v1024
    %1033 = vmatprep.subr.bf16.mxu0 0
    %1034 = vmatpush1.bf16.msra.mxu0 %v1025
    %1035 = vmatprep.subr.bf16.mxu0 0
    %1036 = vmatpush1.bf16.msra.mxu0 0
    %1037 = vmatprep.subr.bf16.mxu0 0
    %1038 = vmatpush1.bf16.msra.mxu0 0
    %1039 = vmatprep.subr.bf16.mxu0 0
    %1040 = vmatpush1.bf16.msra.mxu0 0
    %1041 = vmatprep.subr.bf16.mxu0 0
    %1042 = vmatpush1.bf16.msra.mxu0 0
    %1043 = vmatprep.subr.bf16.mxu0 0
    %1044 = vmatpush1.bf16.msra.mxu0 0
    %1045 = vmatprep.subr.bf16.mxu0 0
    %1046 = vmatpush1.bf16.msra.mxu0 0
    %1047 = vmatprep.subr.bf16.mxu0 0
    %1048 = vmatpush1.bf16.msra.mxu0 0
    %1049 = vmatprep.subr.bf16.mxu0 0
    %1050 = vmatpush1.bf16.msra.mxu0 0
    %1051 = vmatprep.subr.bf16.mxu0 0
    %1052 = vmatpush1.bf16.msra.mxu0 0
    %1053 = vmatprep.subr.bf16.mxu0 0
    %1054 = vmatpush1.bf16.msra.mxu0 0
    %1055 = vmatprep.subr.bf16.mxu0 0
    %1056 = vmatpush1.bf16.msra.mxu0 0
    %1057 = vmatprep.subr.bf16.mxu0 0
    %1058 = vmatpush1.bf16.msra.mxu0 0
    %1059 = vmatprep.subr.bf16.mxu0 0
    %1060 = vmatpush1.bf16.msra.mxu0 0
    %1061 = vmatprep.subr.bf16.mxu0 0
    %1062 = vmatpush1.bf16.msra.mxu0 0
    %1063 = vmatprep.mubr.bf16.mxu0 0
    %1064 = vmatmul.mubr.bf16.gmra.mrb[0].mxu0 %v1029
    %v1065 = vpop.f32.mrb[0].mxu0
    %v1066 = vadd.f32 0.0, %v1065
    %v1067 = vpop.f32.mrb[0].mxu0
    %v1068 = vpop.f32.mrb[0].mxu0
    %v1069 = vpop.f32.mrb[0].mxu0
    %1070 = vdwg.mxu0
    %v1075 = vunpack.c.l.b16 %v1006
    %v1076 = vunpack.c.l.b16 %v1007
    %v1077 = vunpack.c.l.b16 %v1008
    %v1078 = vunpack.c.l.b16 %v1009
    %v1079 = vpack.c.b16 %v1076, %v1075
    %v1080 = vpack.c.b16 %v1078, %v1077
    %1083 = vmatprep.subr.bf16.mxu0 0
    %1084 = vmatpush1.bf16.msra.mxu0 %v1079
    %1085 = vmatprep.subr.bf16.mxu0 0
    %1086 = vmatpush1.bf16.msra.mxu0 %v1080
    %1087 = vmatprep.subr.bf16.mxu0 0
    %1088 = vmatpush1.bf16.msra.mxu0 0
    %1089 = vmatprep.subr.bf16.mxu0 0
    %1090 = vmatpush1.bf16.msra.mxu0 0
    %1091 = vmatprep.subr.bf16.mxu0 0
    %1092 = vmatpush1.bf16.msra.mxu0 0
    %1093 = vmatprep.subr.bf16.mxu0 0
    %1094 = vmatpush1.bf16.msra.mxu0 0
    %1095 = vmatprep.subr.bf16.mxu0 0
    %1096 = vmatpush1.bf16.msra.mxu0 0
    %1097 = vmatprep.subr.bf16.mxu0 0
    %1098 = vmatpush1.bf16.msra.mxu0 0
    %1099 = vmatprep.subr.bf16.mxu0 0
    %1100 = vmatpush1.bf16.msra.mxu0 0
    %1101 = vmatprep.subr.bf16.mxu0 0
    %1102 = vmatpush1.bf16.msra.mxu0 0
    %1103 = vmatprep.subr.bf16.mxu0 0
    %1104 = vmatpush1.bf16.msra.mxu0 0
    %1105 = vmatprep.subr.bf16.mxu0 0
    %1106 = vmatpush1.bf16.msra.mxu0 0
    %1107 = vmatprep.subr.bf16.mxu0 0
    %1108 = vmatpush1.bf16.msra.mxu0 0
    %1109 = vmatprep.subr.bf16.mxu0 0
    %1110 = vmatpush1.bf16.msra.mxu0 0
    %1111 = vmatprep.subr.bf16.mxu0 0
    %1112 = vmatpush1.bf16.msra.mxu0 0
    %1113 = vmatprep.subr.bf16.mxu0 0
    %1114 = vmatpush1.bf16.msra.mxu0 0
    %1115 = vmatprep.mubr.bf16.mxu0 0
    %1116 = vmatmul.mubr.bf16.gmra.mrb[0].mxu0 %v940
    %v1117 = vpop.f32.mrb[0].mxu0
    %v1118 = vadd.f32 %v1066, %v1117
    %v1119 = vpop.f32.mrb[0].mxu0
    %v1120 = vpop.f32.mrb[0].mxu0
    %v1121 = vpop.f32.mrb[0].mxu0
    %1122 = vdwg.mxu0
    %v1123 = vld [vmem:[%s6] sm:$0x1]
    %v1125 = vlaneseq
    %v1126 = vshrl.u32 %v1125, 7
    %v1127 = vsub.s32 0, %v1126
    %v1128 = vrot.slane %v1123, %v1127
    %v1130 = vadd.f32 %v1118, %v1128
    %v1131 = vtanh.pop %v1130
    %v1132 = vmul.f32 %v1131, 0.5
    %v1133 = vadd.f32 %v1132, 0.5
    %v1134 = vmul.f32 %v1133, %v903
    %1136 = vrot.lane.b32.xlu0 %v1131, 64
    %v1137 = vpop.permute.xlu0 %1136
    %v1139 = vmul.f32 %v1133, %v1137
    %1141 = vrot.lane.b32.xlu0 %v1139, 32
    %v1142 = vpop.permute.xlu0 %1141
    %v1144 = vadd.f32 %v1134, %v1142
    %v1145 = vtanh.pop %v1144
    %1147 = vrot.lane.b32.xlu0 %v1145, 64
    %v1148 = vpop.permute.xlu0 %1147
    %v1150 = vmul.f32 %v1133, %v1148
    %v1151 = vpack.c.bf16 %v1150, %v1150
    %v1153 = vrot.slane %v1151, 5
    %1154 = vrot.lane.b32.xlu0 %v1153, 32
    %v1155 = vpop.permute.xlu0 %1154
    %vm1157 = vcmask 257027
    %1158 = vst.msk [vmem:[#allocation2] sm:$0x8] %vm1157, %v1155
    %v1159 = vpack.c.bf16 %v1005, %v1005
    %v1160 = vld [vmem:[%s2] sm:$0xf]
    %v1161 = vld [vmem:[%s2 + $0x4] sm:$0xf]
    %v1162 = vld [vmem:[%s2 + $0x8] sm:$0xf]
    %v1163 = vld [vmem:[%s2 + $0xc] sm:$0xf]
    %1165 = vrot.lane.b32.xlu0 %v1159, 32
    %v1166 = vpop.permute.xlu0 %1165
    %v1171 = vunpack.c.l.b16 %v1160
    %v1172 = vunpack.c.l.b16 %v1161
    %v1173 = vunpack.c.l.b16 %v1162
    %v1174 = vunpack.c.l.b16 %v1163
    %v1175 = vpack.c.b16 %v1172, %v1171
    %v1176 = vpack.c.b16 %v1174, %v1173
    %v1180 = vsel %vm134, %v1166, 0
    %1182 = vmatprep.subr.bf16.mxu0 0
    %1183 = vmatpush1.bf16.msra.mxu0 %v1175
    %1184 = vmatprep.subr.bf16.mxu0 0
    %1185 = vmatpush1.bf16.msra.mxu0 %v1176
    %1186 = vmatprep.subr.bf16.mxu0 0
    %1187 = vmatpush1.bf16.msra.mxu0 0
    %1188 = vmatprep.subr.bf16.mxu0 0
    %1189 = vmatpush1.bf16.msra.mxu0 0
    %1190 = vmatprep.subr.bf16.mxu0 0
    %1191 = vmatpush1.bf16.msra.mxu0 0
    %1192 = vmatprep.subr.bf16.mxu0 0
    %1193 = vmatpush1.bf16.msra.mxu0 0
    %1194 = vmatprep.subr.bf16.mxu0 0
    %1195 = vmatpush1.bf16.msra.mxu0 0
    %1196 = vmatprep.subr.bf16.mxu0 0
    %1197 = vmatpush1.bf16.msra.mxu0 0
    %1198 = vmatprep.subr.bf16.mxu0 0
    %1199 = vmatpush1.bf16.msra.mxu0 0
    %1200 = vmatprep.subr.bf16.mxu0 0
    %1201 = vmatpush1.bf16.msra.mxu0 0
    %1202 = vmatprep.subr.bf16.mxu0 0
    %1203 = vmatpush1.bf16.msra.mxu0 0
    %1204 = vmatprep.subr.bf16.mxu0 0
    %1205 = vmatpush1.bf16.msra.mxu0 0
    %1206 = vmatprep.subr.bf16.mxu0 0
    %1207 = vmatpush1.bf16.msra.mxu0 0
    %1208 = vmatprep.subr.bf16.mxu0 0
    %1209 = vmatpush1.bf16.msra.mxu0 0
    %1210 = vmatprep.subr.bf16.mxu0 0
    %1211 = vmatpush1.bf16.msra.mxu0 0
    %1212 = vmatprep.subr.bf16.mxu0 0
    %1213 = vmatpush1.bf16.msra.mxu0 0
    %1214 = vmatprep.mubr.bf16.mxu0 0
    %1215 = vmatmul.mubr.bf16.gmra.mrb[0].mxu0 %v1180
    %v1216 = vpop.f32.mrb[0].mxu0
    %v1217 = vadd.f32 0.0, %v1216
    %v1218 = vpop.f32.mrb[0].mxu0
    %v1219 = vpop.f32.mrb[0].mxu0
    %v1220 = vpop.f32.mrb[0].mxu0
    %1221 = vdwg.mxu0
    %v1223 = vrot.slane %v1217, 6
    %v1225 = vadd.f32 %v108, %v1223
    %v1226 = vtanh.pop %v1225
    %v1227 = vmul.f32 %v1226, 0.5
    %v1228 = vadd.f32 %v1227, 0.5
    %v1230 = vrot.slane %v999, 6
    %v1232 = vmul.f32 %v1228, %v1230
    %1234 = vrot.lane.b32.xlu0 %v1226, 64
    %v1235 = vpop.permute.xlu0 %1234
    %v1237 = vmul.f32 %v1228, %v1235
    %1239 = vrot.lane.b32.xlu0 %v1237, 32
    %v1240 = vpop.permute.xlu0 %1239
    %v1242 = vadd.f32 %v1232, %v1240
    %v1243 = vtanh.pop %v1242
    %1245 = vrot.lane.b32.xlu0 %v1243, 64
    %v1246 = vpop.permute.xlu0 %1245
    %v1248 = vmul.f32 %v1228, %v1246
    %v1249 = vld [vmem:[%s4] sm:$0xf]
    %v1250 = vld [vmem:[%s4 + $0x4] sm:$0xf]
    %v1251 = vld [vmem:[%s4 + $0x8] sm:$0xf]
    %v1252 = vld [vmem:[%s4 + $0xc] sm:$0xf]
    %v1253 = vld [vmem:[%s5] sm:$0xf]
    %v1254 = vld [vmem:[%s5 + $0x4] sm:$0xf]
    %v1255 = vld [vmem:[%s5 + $0x8] sm:$0xf]
    %v1256 = vld [vmem:[%s5 + $0xc] sm:$0xf]
    %1257 = vrot.lane.b32.xlu0 %v1151, 32
    %v1258 = vpop.permute.xlu0 %1257
    %v1263 = vunpack.c.l.b16 %v1253
    %v1264 = vunpack.c.l.b16 %v1254
    %v1265 = vunpack.c.l.b16 %v1255
    %v1266 = vunpack.c.l.b16 %v1256
    %v1267 = vpack.c.b16 %v1264, %v1263
    %v1268 = vpack.c.b16 %v1266, %v1265
    %v1272 = vsel %vm134, %v1258, 0
    %1274 = vmatprep.subr.bf16.mxu0 0
    %1275 = vmatpush1.bf16.msra.mxu0 %v1267
    %1276 = vmatprep.subr.bf16.mxu0 0
    %1277 = vmatpush1.bf16.msra.mxu0 %v1268
    %1278 = vmatprep.subr.bf16.mxu0 0
    %1279 = vmatpush1.bf16.msra.mxu0 0
    %1280 = vmatprep.subr.bf16.mxu0 0
    %1281 = vmatpush1.bf16.msra.mxu0 0
    %1282 = vmatprep.subr.bf16.mxu0 0
    %1283 = vmatpush1.bf16.msra.mxu0 0
    %1284 = vmatprep.subr.bf16.mxu0 0
    %1285 = vmatpush1.bf16.msra.mxu0 0
    %1286 = vmatprep.subr.bf16.mxu0 0
    %1287 = vmatpush1.bf16.msra.mxu0 0
    %1288 = vmatprep.subr.bf16.mxu0 0
    %1289 = vmatpush1.bf16.msra.mxu0 0
    %1290 = vmatprep.subr.bf16.mxu0 0
    %1291 = vmatpush1.bf16.msra.mxu0 0
    %1292 = vmatprep.subr.bf16.mxu0 0
    %1293 = vmatpush1.bf16.msra.mxu0 0
    %1294 = vmatprep.subr.bf16.mxu0 0
    %1295 = vmatpush1.bf16.msra.mxu0 0
    %1296 = vmatprep.subr.bf16.mxu0 0
    %1297 = vmatpush1.bf16.msra.mxu0 0
    %1298 = vmatprep.subr.bf16.mxu0 0
    %1299 = vmatpush1.bf16.msra.mxu0 0
    %1300 = vmatprep.subr.bf16.mxu0 0
    %1301 = vmatpush1.bf16.msra.mxu0 0
    %1302 = vmatprep.subr.bf16.mxu0 0
    %1303 = vmatpush1.bf16.msra.mxu0 0
    %1304 = vmatprep.subr.bf16.mxu0 0
    %1305 = vmatpush1.bf16.msra.mxu0 0
    %1306 = vmatprep.mubr.bf16.mxu0 0
    %1307 = vmatmul.mubr.bf16.gmra.mrb[0].mxu0 %v1272
    %v1308 = vpop.f32.mrb[0].mxu0
    %v1309 = vadd.f32 0.0, %v1308
    %v1310 = vpop.f32.mrb[0].mxu0
    %v1311 = vpop.f32.mrb[0].mxu0
    %v1312 = vpop.f32.mrb[0].mxu0
    %1313 = vdwg.mxu0
    %v1318 = vunpack.c.l.b16 %v1249
    %v1319 = vunpack.c.l.b16 %v1250
    %v1320 = vunpack.c.l.b16 %v1251
    %v1321 = vunpack.c.l.b16 %v1252
    %v1322 = vpack.c.b16 %v1319, %v1318
    %v1323 = vpack.c.b16 %v1321, %v1320
    %1326 = vmatprep.subr.bf16.mxu0 0
    %1327 = vmatpush1.bf16.msra.mxu0 %v1322
    %1328 = vmatprep.subr.bf16.mxu0 0
    %1329 = vmatpush1.bf16.msra.mxu0 %v1323
    %1330 = vmatprep.subr.bf16.mxu0 0
    %1331 = vmatpush1.bf16.msra.mxu0 0
    %1332 = vmatprep.subr.bf16.mxu0 0
    %1333 = vmatpush1.bf16.msra.mxu0 0
    %1334 = vmatprep.subr.bf16.mxu0 0
    %1335 = vmatpush1.bf16.msra.mxu0 0
    %1336 = vmatprep.subr.bf16.mxu0 0
    %1337 = vmatpush1.bf16.msra.mxu0 0
    %1338 = vmatprep.subr.bf16.mxu0 0
    %1339 = vmatpush1.bf16.msra.mxu0 0
    %1340 = vmatprep.subr.bf16.mxu0 0
    %1341 = vmatpush1.bf16.msra.mxu0 0
    %1342 = vmatprep.subr.bf16.mxu0 0
    %1343 = vmatpush1.bf16.msra.mxu0 0
    %1344 = vmatprep.subr.bf16.mxu0 0
    %1345 = vmatpush1.bf16.msra.mxu0 0
    %1346 = vmatprep.subr.bf16.mxu0 0
    %1347 = vmatpush1.bf16.msra.mxu0 0
    %1348 = vmatprep.subr.bf16.mxu0 0
    %1349 = vmatpush1.bf16.msra.mxu0 0
    %1350 = vmatprep.subr.bf16.mxu0 0
    %1351 = vmatpush1.bf16.msra.mxu0 0
    %1352 = vmatprep.subr.bf16.mxu0 0
    %1353 = vmatpush1.bf16.msra.mxu0 0
    %1354 = vmatprep.subr.bf16.mxu0 0
    %1355 = vmatpush1.bf16.msra.mxu0 0
    %1356 = vmatprep.subr.bf16.mxu0 0
    %1357 = vmatpush1.bf16.msra.mxu0 0
    %1358 = vmatprep.mubr.bf16.mxu0 0
    %1359 = vmatmul.mubr.bf16.gmra.mrb[0].mxu0 %v1180
    %v1360 = vpop.f32.mrb[0].mxu0
    %v1361 = vadd.f32 %v1309, %v1360
    %v1362 = vpop.f32.mrb[0].mxu0
    %v1363 = vpop.f32.mrb[0].mxu0
    %v1364 = vpop.f32.mrb[0].mxu0
    %1365 = vdwg.mxu0
    %v1366 = vld [vmem:[%s6] sm:$0x1]
    %v1368 = vlaneseq
    %v1369 = vshrl.u32 %v1368, 7
    %v1370 = vsub.s32 0, %v1369
    %v1371 = vrot.slane %v1366, %v1370
    %v1373 = vadd.f32 %v1361, %v1371
    %v1374 = vtanh.pop %v1373
    %v1375 = vmul.f32 %v1374, 0.5
    %v1376 = vadd.f32 %v1375, 0.5
    %v1377 = vmul.f32 %v1376, %v1144
    %1379 = vrot.lane.b32.xlu0 %v1374, 64
    %v1380 = vpop.permute.xlu0 %1379
    %v1382 = vmul.f32 %v1376, %v1380
    %1384 = vrot.lane.b32.xlu0 %v1382, 32
    %v1385 = vpop.permute.xlu0 %1384
    %v1387 = vadd.f32 %v1377, %v1385
    %v1388 = vtanh.pop %v1387
    %1390 = vrot.lane.b32.xlu0 %v1388, 64
    %v1391 = vpop.permute.xlu0 %1390
    %v1393 = vmul.f32 %v1376, %v1391
    %v1394 = vpack.c.bf16 %v1393, %v1393
    %v1396 = vrot.slane %v1394, 4
    %1397 = vrot.lane.b32.xlu0 %v1396, 32
    %v1398 = vpop.permute.xlu0 %1397
    %vm1400 = vcmask 258052
    %1401 = vst.msk [vmem:[#allocation2] sm:$0x10] %vm1400, %v1398
    %v1402 = vpack.c.bf16 %v1248, %v1248
    %v1403 = vld [vmem:[%s2] sm:$0xf]
    %v1404 = vld [vmem:[%s2 + $0x4] sm:$0xf]
    %v1405 = vld [vmem:[%s2 + $0x8] sm:$0xf]
    %v1406 = vld [vmem:[%s2 + $0xc] sm:$0xf]
    %v1408 = vrot.slane %v1402, 1
    %1409 = vrot.lane.b32.xlu0 %v1408, 32
    %v1410 = vpop.permute.xlu0 %1409
    %v1415 = vunpack.c.l.b16 %v1403
    %v1416 = vunpack.c.l.b16 %v1404
    %v1417 = vunpack.c.l.b16 %v1405
    %v1418 = vunpack.c.l.b16 %v1406
    %v1419 = vpack.c.b16 %v1416, %v1415
    %v1420 = vpack.c.b16 %v1418, %v1417
    %v1424 = vsel %vm134, %v1410, 0
    %1426 = vmatprep.subr.bf16.mxu0 0
    %1427 = vmatpush1.bf16.msra.mxu0 %v1419
    %1428 = vmatprep.subr.bf16.mxu0 0
    %1429 = vmatpush1.bf16.msra.mxu0 %v1420
    %1430 = vmatprep.subr.bf16.mxu0 0
    %1431 = vmatpush1.bf16.msra.mxu0 0
    %1432 = vmatprep.subr.bf16.mxu0 0
    %1433 = vmatpush1.bf16.msra.mxu0 0
    %1434 = vmatprep.subr.bf16.mxu0 0
    %1435 = vmatpush1.bf16.msra.mxu0 0
    %1436 = vmatprep.subr.bf16.mxu0 0
    %1437 = vmatpush1.bf16.msra.mxu0 0
    %1438 = vmatprep.subr.bf16.mxu0 0
    %1439 = vmatpush1.bf16.msra.mxu0 0
    %1440 = vmatprep.subr.bf16.mxu0 0
    %1441 = vmatpush1.bf16.msra.mxu0 0
    %1442 = vmatprep.subr.bf16.mxu0 0
    %1443 = vmatpush1.bf16.msra.mxu0 0
    %1444 = vmatprep.subr.bf16.mxu0 0
    %1445 = vmatpush1.bf16.msra.mxu0 0
    %1446 = vmatprep.subr.bf16.mxu0 0
    %1447 = vmatpush1.bf16.msra.mxu0 0
    %1448 = vmatprep.subr.bf16.mxu0 0
    %1449 = vmatpush1.bf16.msra.mxu0 0
    %1450 = vmatprep.subr.bf16.mxu0 0
    %1451 = vmatpush1.bf16.msra.mxu0 0
    %1452 = vmatprep.subr.bf16.mxu0 0
    %1453 = vmatpush1.bf16.msra.mxu0 0
    %1454 = vmatprep.subr.bf16.mxu0 0
    %1455 = vmatpush1.bf16.msra.mxu0 0
    %1456 = vmatprep.subr.bf16.mxu0 0
    %1457 = vmatpush1.bf16.msra.mxu0 0
    %1458 = vmatprep.mubr.bf16.mxu0 0
    %1459 = vmatmul.mubr.bf16.gmra.mrb[0].mxu0 %v1424
    %v1460 = vpop.f32.mrb[0].mxu0
    %v1461 = vadd.f32 0.0, %v1460
    %v1462 = vpop.f32.mrb[0].mxu0
    %v1463 = vpop.f32.mrb[0].mxu0
    %v1464 = vpop.f32.mrb[0].mxu0
    %1465 = vdwg.mxu0
    %v1467 = vrot.slane %v1461, 4
    %v1469 = vadd.f32 %v108, %v1467
    %v1470 = vtanh.pop %v1469
    %v1471 = vmul.f32 %v1470, 0.5
    %v1472 = vadd.f32 %v1471, 0.5
    %v1474 = vrot.slane %v1242, 6
    %v1476 = vmul.f32 %v1472, %v1474
    %1478 = vrot.lane.b32.xlu0 %v1470, 64
    %v1479 = vpop.permute.xlu0 %1478
    %v1481 = vmul.f32 %v1472, %v1479
    %1483 = vrot.lane.b32.xlu0 %v1481, 32
    %v1484 = vpop.permute.xlu0 %1483
    %v1486 = vadd.f32 %v1476, %v1484
    %v1487 = vtanh.pop %v1486
    %1489 = vrot.lane.b32.xlu0 %v1487, 64
    %v1490 = vpop.permute.xlu0 %1489
    %v1492 = vmul.f32 %v1472, %v1490
    %v1493 = vld [vmem:[%s4] sm:$0xf]
    %v1494 = vld [vmem:[%s4 + $0x4] sm:$0xf]
    %v1495 = vld [vmem:[%s4 + $0x8] sm:$0xf]
    %v1496 = vld [vmem:[%s4 + $0xc] sm:$0xf]
    %v1497 = vld [vmem:[%s5] sm:$0xf]
    %v1498 = vld [vmem:[%s5 + $0x4] sm:$0xf]
    %v1499 = vld [vmem:[%s5 + $0x8] sm:$0xf]
    %v1500 = vld [vmem:[%s5 + $0xc] sm:$0xf]
    %1501 = vrot.lane.b32.xlu0 %v1394, 32
    %v1502 = vpop.permute.xlu0 %1501
    %v1507 = vunpack.c.l.b16 %v1497
    %v1508 = vunpack.c.l.b16 %v1498
    %v1509 = vunpack.c.l.b16 %v1499
    %v1510 = vunpack.c.l.b16 %v1500
    %v1511 = vpack.c.b16 %v1508, %v1507
    %v1512 = vpack.c.b16 %v1510, %v1509
    %v1516 = vsel %vm134, %v1502, 0
    %1518 = vmatprep.subr.bf16.mxu0 0
    %1519 = vmatpush1.bf16.msra.mxu0 %v1511
    %1520 = vmatprep.subr.bf16.mxu0 0
    %1521 = vmatpush1.bf16.msra.mxu0 %v1512
    %1522 = vmatprep.subr.bf16.mxu0 0
    %1523 = vmatpush1.bf16.msra.mxu0 0
    %1524 = vmatprep.subr.bf16.mxu0 0
    %1525 = vmatpush1.bf16.msra.mxu0 0
    %1526 = vmatprep.subr.bf16.mxu0 0
    %1527 = vmatpush1.bf16.msra.mxu0 0
    %1528 = vmatprep.subr.bf16.mxu0 0
    %1529 = vmatpush1.bf16.msra.mxu0 0
    %1530 = vmatprep.subr.bf16.mxu0 0
    %1531 = vmatpush1.bf16.msra.mxu0 0
    %1532 = vmatprep.subr.bf16.mxu0 0
    %1533 = vmatpush1.bf16.msra.mxu0 0
    %1534 = vmatprep.subr.bf16.mxu0 0
    %1535 = vmatpush1.bf16.msra.mxu0 0
    %1536 = vmatprep.subr.bf16.mxu0 0
    %1537 = vmatpush1.bf16.msra.mxu0 0
    %1538 = vmatprep.subr.bf16.mxu0 0
    %1539 = vmatpush1.bf16.msra.mxu0 0
    %1540 = vmatprep.subr.bf16.mxu0 0
    %1541 = vmatpush1.bf16.msra.mxu0 0
    %1542 = vmatprep.subr.bf16.mxu0 0
    %1543 = vmatpush1.bf16.msra.mxu0 0
    %1544 = vmatprep.subr.bf16.mxu0 0
    %1545 = vmatpush1.bf16.msra.mxu0 0
    %1546 = vmatprep.subr.bf16.mxu0 0
    %1547 = vmatpush1.bf16.msra.mxu0 0
    %1548 = vmatprep.subr.bf16.mxu0 0
    %1549 = vmatpush1.bf16.msra.mxu0 0
    %1550 = vmatprep.mubr.bf16.mxu0 0
    %1551 = vmatmul.mubr.bf16.gmra.mrb[0].mxu0 %v1516
    %v1552 = vpop.f32.mrb[0].mxu0
    %v1553 = vadd.f32 0.0, %v1552
    %v1554 = vpop.f32.mrb[0].mxu0
    %v1555 = vpop.f32.mrb[0].mxu0
    %v1556 = vpop.f32.mrb[0].mxu0
    %1557 = vdwg.mxu0
    %v1562 = vunpack.c.l.b16 %v1493
    %v1563 = vunpack.c.l.b16 %v1494
    %v1564 = vunpack.c.l.b16 %v1495
    %v1565 = vunpack.c.l.b16 %v1496
    %v1566 = vpack.c.b16 %v1563, %v1562
    %v1567 = vpack.c.b16 %v1565, %v1564
    %1570 = vmatprep.subr.bf16.mxu0 0
    %1571 = vmatpush1.bf16.msra.mxu0 %v1566
    %1572 = vmatprep.subr.bf16.mxu0 0
    %1573 = vmatpush1.bf16.msra.mxu0 %v1567
    %1574 = vmatprep.subr.bf16.mxu0 0
    %1575 = vmatpush1.bf16.msra.mxu0 0
    %1576 = vmatprep.subr.bf16.mxu0 0
    %1577 = vmatpush1.bf16.msra.mxu0 0
    %1578 = vmatprep.subr.bf16.mxu0 0
    %1579 = vmatpush1.bf16.msra.mxu0 0
    %1580 = vmatprep.subr.bf16.mxu0 0
    %1581 = vmatpush1.bf16.msra.mxu0 0
    %1582 = vmatprep.subr.bf16.mxu0 0
    %1583 = vmatpush1.bf16.msra.mxu0 0
    %1584 = vmatprep.subr.bf16.mxu0 0
    %1585 = vmatpush1.bf16.msra.mxu0 0
    %1586 = vmatprep.subr.bf16.mxu0 0
    %1587 = vmatpush1.bf16.msra.mxu0 0
    %1588 = vmatprep.subr.bf16.mxu0 0
    %1589 = vmatpush1.bf16.msra.mxu0 0
    %1590 = vmatprep.subr.bf16.mxu0 0
    %1591 = vmatpush1.bf16.msra.mxu0 0
    %1592 = vmatprep.subr.bf16.mxu0 0
    %1593 = vmatpush1.bf16.msra.mxu0 0
    %1594 = vmatprep.subr.bf16.mxu0 0
    %1595 = vmatpush1.bf16.msra.mxu0 0
    %1596 = vmatprep.subr.bf16.mxu0 0
    %1597 = vmatpush1.bf16.msra.mxu0 0
    %1598 = vmatprep.subr.bf16.mxu0 0
    %1599 = vmatpush1.bf16.msra.mxu0 0
    %1600 = vmatprep.subr.bf16.mxu0 0
    %1601 = vmatpush1.bf16.msra.mxu0 0
    %1602 = vmatprep.mubr.bf16.mxu0 0
    %1603 = vmatmul.mubr.bf16.gmra.mrb[0].mxu0 %v1424
    %v1604 = vpop.f32.mrb[0].mxu0
    %v1605 = vadd.f32 %v1553, %v1604
    %v1606 = vpop.f32.mrb[0].mxu0
    %v1607 = vpop.f32.mrb[0].mxu0
    %v1608 = vpop.f32.mrb[0].mxu0
    %1609 = vdwg.mxu0
    %v1610 = vld [vmem:[%s6] sm:$0x1]
    %v1612 = vlaneseq
    %v1613 = vshrl.u32 %v1612, 7
    %v1614 = vsub.s32 0, %v1613
    %v1615 = vrot.slane %v1610, %v1614
    %v1617 = vadd.f32 %v1605, %v1615
    %v1618 = vtanh.pop %v1617
    %v1619 = vmul.f32 %v1618, 0.5
    %v1620 = vadd.f32 %v1619, 0.5
    %v1621 = vmul.f32 %v1620, %v1387
    %1623 = vrot.lane.b32.xlu0 %v1618, 64
    %v1624 = vpop.permute.xlu0 %1623
    %v1626 = vmul.f32 %v1620, %v1624
    %1628 = vrot.lane.b32.xlu0 %v1626, 32
    %v1629 = vpop.permute.xlu0 %1628
    %v1631 = vadd.f32 %v1621, %v1629
    %v1632 = vtanh.pop %v1631
    %1634 = vrot.lane.b32.xlu0 %v1632, 64
    %v1635 = vpop.permute.xlu0 %1634
    %v1637 = vmul.f32 %v1620, %v1635
    %v1638 = vpack.c.bf16 %v1637, %v1637
    %v1640 = vrot.slane %v1638, 3
    %1641 = vrot.lane.b32.xlu0 %v1640, 32
    %v1642 = vpop.permute.xlu0 %1641
    %vm1644 = vcmask 259077
    %1645 = vst.msk [vmem:[#allocation2] sm:$0x20] %vm1644, %v1642
    %v1646 = vpack.c.bf16 %v1492, %v1492
    %v1647 = vld [vmem:[%s2] sm:$0xf]
    %v1648 = vld [vmem:[%s2 + $0x4] sm:$0xf]
    %v1649 = vld [vmem:[%s2 + $0x8] sm:$0xf]
    %v1650 = vld [vmem:[%s2 + $0xc] sm:$0xf]
    %v1652 = vrot.slane %v1646, 2
    %1653 = vrot.lane.b32.xlu0 %v1652, 32
    %v1654 = vpop.permute.xlu0 %1653
    %v1659 = vunpack.c.l.b16 %v1647
    %v1660 = vunpack.c.l.b16 %v1648
    %v1661 = vunpack.c.l.b16 %v1649
    %v1662 = vunpack.c.l.b16 %v1650
    %v1663 = vpack.c.b16 %v1660, %v1659
    %v1664 = vpack.c.b16 %v1662, %v1661
    %v1668 = vsel %vm134, %v1654, 0
    %1670 = vmatprep.subr.bf16.mxu0 0
    %1671 = vmatpush1.bf16.msra.mxu0 %v1663
    %1672 = vmatprep.subr.bf16.mxu0 0
    %1673 = vmatpush1.bf16.msra.mxu0 %v1664
    %1674 = vmatprep.subr.bf16.mxu0 0
    %1675 = vmatpush1.bf16.msra.mxu0 0
    %1676 = vmatprep.subr.bf16.mxu0 0
    %1677 = vmatpush1.bf16.msra.mxu0 0
    %1678 = vmatprep.subr.bf16.mxu0 0
    %1679 = vmatpush1.bf16.msra.mxu0 0
    %1680 = vmatprep.subr.bf16.mxu0 0
    %1681 = vmatpush1.bf16.msra.mxu0 0
    %1682 = vmatprep.subr.bf16.mxu0 0
    %1683 = vmatpush1.bf16.msra.mxu0 0
    %1684 = vmatprep.subr.bf16.mxu0 0
    %1685 = vmatpush1.bf16.msra.mxu0 0
    %1686 = vmatprep.subr.bf16.mxu0 0
    %1687 = vmatpush1.bf16.msra.mxu0 0
    %1688 = vmatprep.subr.bf16.mxu0 0
    %1689 = vmatpush1.bf16.msra.mxu0 0
    %1690 = vmatprep.subr.bf16.mxu0 0
    %1691 = vmatpush1.bf16.msra.mxu0 0
    %1692 = vmatprep.subr.bf16.mxu0 0
    %1693 = vmatpush1.bf16.msra.mxu0 0
    %1694 = vmatprep.subr.bf16.mxu0 0
    %1695 = vmatpush1.bf16.msra.mxu0 0
    %1696 = vmatprep.subr.bf16.mxu0 0
    %1697 = vmatpush1.bf16.msra.mxu0 0
    %1698 = vmatprep.subr.bf16.mxu0 0
    %1699 = vmatpush1.bf16.msra.mxu0 0
    %1700 = vmatprep.subr.bf16.mxu0 0
    %1701 = vmatpush1.bf16.msra.mxu0 0
    %1702 = vmatprep.mubr.bf16.mxu0 0
    %1703 = vmatmul.mubr.bf16.gmra.mrb[0].mxu0 %v1668
    %v1704 = vpop.f32.mrb[0].mxu0
    %v1705 = vadd.f32 0.0, %v1704
    %v1706 = vpop.f32.mrb[0].mxu0
    %v1707 = vpop.f32.mrb[0].mxu0
    %v1708 = vpop.f32.mrb[0].mxu0
    %1709 = vdwg.mxu0
    %v1711 = vrot.slane %v1705, 2
    %v1713 = vadd.f32 %v108, %v1711
    %v1714 = vtanh.pop %v1713
    %v1715 = vmul.f32 %v1714, 0.5
    %v1716 = vadd.f32 %v1715, 0.5
    %v1718 = vrot.slane %v1486, 6
    %v1720 = vmul.f32 %v1716, %v1718
    %1722 = vrot.lane.b32.xlu0 %v1714, 64
    %v1723 = vpop.permute.xlu0 %1722
    %v1725 = vmul.f32 %v1716, %v1723
    %1727 = vrot.lane.b32.xlu0 %v1725, 32
    %v1728 = vpop.permute.xlu0 %1727
    %v1730 = vadd.f32 %v1720, %v1728
    %v1731 = vtanh.pop %v1730
    %1733 = vrot.lane.b32.xlu0 %v1731, 64
    %v1734 = vpop.permute.xlu0 %1733
    %v1736 = vmul.f32 %v1716, %v1734
    %v1737 = vld [vmem:[%s4] sm:$0xf]
    %v1738 = vld [vmem:[%s4 + $0x4] sm:$0xf]
    %v1739 = vld [vmem:[%s4 + $0x8] sm:$0xf]
    %v1740 = vld [vmem:[%s4 + $0xc] sm:$0xf]
    %v1741 = vld [vmem:[%s5] sm:$0xf]
    %v1742 = vld [vmem:[%s5 + $0x4] sm:$0xf]
    %v1743 = vld [vmem:[%s5 + $0x8] sm:$0xf]
    %v1744 = vld [vmem:[%s5 + $0xc] sm:$0xf]
    %1745 = vrot.lane.b32.xlu0 %v1638, 32
    %v1746 = vpop.permute.xlu0 %1745
    %v1751 = vunpack.c.l.b16 %v1741
    %v1752 = vunpack.c.l.b16 %v1742
    %v1753 = vunpack.c.l.b16 %v1743
    %v1754 = vunpack.c.l.b16 %v1744
    %v1755 = vpack.c.b16 %v1752, %v1751
    %v1756 = vpack.c.b16 %v1754, %v1753
    %v1760 = vsel %vm134, %v1746, 0
    %1762 = vmatprep.subr.bf16.mxu0 0
    %1763 = vmatpush1.bf16.msra.mxu0 %v1755
    %1764 = vmatprep.subr.bf16.mxu0 0
    %1765 = vmatpush1.bf16.msra.mxu0 %v1756
    %1766 = vmatprep.subr.bf16.mxu0 0
    %1767 = vmatpush1.bf16.msra.mxu0 0
    %1768 = vmatprep.subr.bf16.mxu0 0
    %1769 = vmatpush1.bf16.msra.mxu0 0
    %1770 = vmatprep.subr.bf16.mxu0 0
    %1771 = vmatpush1.bf16.msra.mxu0 0
    %1772 = vmatprep.subr.bf16.mxu0 0
    %1773 = vmatpush1.bf16.msra.mxu0 0
    %1774 = vmatprep.subr.bf16.mxu0 0
    %1775 = vmatpush1.bf16.msra.mxu0 0
    %1776 = vmatprep.subr.bf16.mxu0 0
    %1777 = vmatpush1.bf16.msra.mxu0 0
    %1778 = vmatprep.subr.bf16.mxu0 0
    %1779 = vmatpush1.bf16.msra.mxu0 0
    %1780 = vmatprep.subr.bf16.mxu0 0
    %1781 = vmatpush1.bf16.msra.mxu0 0
    %1782 = vmatprep.subr.bf16.mxu0 0
    %1783 = vmatpush1.bf16.msra.mxu0 0
    %1784 = vmatprep.subr.bf16.mxu0 0
    %1785 = vmatpush1.bf16.msra.mxu0 0
    %1786 = vmatprep.subr.bf16.mxu0 0
    %1787 = vmatpush1.bf16.msra.mxu0 0
    %1788 = vmatprep.subr.bf16.mxu0 0
    %1789 = vmatpush1.bf16.msra.mxu0 0
    %1790 = vmatprep.subr.bf16.mxu0 0
    %1791 = vmatpush1.bf16.msra.mxu0 0
    %1792 = vmatprep.subr.bf16.mxu0 0
    %1793 = vmatpush1.bf16.msra.mxu0 0
    %1794 = vmatprep.mubr.bf16.mxu0 0
    %1795 = vmatmul.mubr.bf16.gmra.mrb[0].mxu0 %v1760
    %v1796 = vpop.f32.mrb[0].mxu0
    %v1797 = vadd.f32 0.0, %v1796
    %v1798 = vpop.f32.mrb[0].mxu0
    %v1799 = vpop.f32.mrb[0].mxu0
    %v1800 = vpop.f32.mrb[0].mxu0
    %1801 = vdwg.mxu0
    %v1806 = vunpack.c.l.b16 %v1737
    %v1807 = vunpack.c.l.b16 %v1738
    %v1808 = vunpack.c.l.b16 %v1739
    %v1809 = vunpack.c.l.b16 %v1740
    %v1810 = vpack.c.b16 %v1807, %v1806
    %v1811 = vpack.c.b16 %v1809, %v1808
    %1814 = vmatprep.subr.bf16.mxu0 0
    %1815 = vmatpush1.bf16.msra.mxu0 %v1810
    %1816 = vmatprep.subr.bf16.mxu0 0
    %1817 = vmatpush1.bf16.msra.mxu0 %v1811
    %1818 = vmatprep.subr.bf16.mxu0 0
    %1819 = vmatpush1.bf16.msra.mxu0 0
    %1820 = vmatprep.subr.bf16.mxu0 0
    %1821 = vmatpush1.bf16.msra.mxu0 0
    %1822 = vmatprep.subr.bf16.mxu0 0
    %1823 = vmatpush1.bf16.msra.mxu0 0
    %1824 = vmatprep.subr.bf16.mxu0 0
    %1825 = vmatpush1.bf16.msra.mxu0 0
    %1826 = vmatprep.subr.bf16.mxu0 0
    %1827 = vmatpush1.bf16.msra.mxu0 0
    %1828 = vmatprep.subr.bf16.mxu0 0
    %1829 = vmatpush1.bf16.msra.mxu0 0
    %1830 = vmatprep.subr.bf16.mxu0 0
    %1831 = vmatpush1.bf16.msra.mxu0 0
    %1832 = vmatprep.subr.bf16.mxu0 0
    %1833 = vmatpush1.bf16.msra.mxu0 0
    %1834 = vmatprep.subr.bf16.mxu0 0
    %1835 = vmatpush1.bf16.msra.mxu0 0
    %1836 = vmatprep.subr.bf16.mxu0 0
    %1837 = vmatpush1.bf16.msra.mxu0 0
    %1838 = vmatprep.subr.bf16.mxu0 0
    %1839 = vmatpush1.bf16.msra.mxu0 0
    %1840 = vmatprep.subr.bf16.mxu0 0
    %1841 = vmatpush1.bf16.msra.mxu0 0
    %1842 = vmatprep.subr.bf16.mxu0 0
    %1843 = vmatpush1.bf16.msra.mxu0 0
    %1844 = vmatprep.subr.bf16.mxu0 0
    %1845 = vmatpush1.bf16.msra.mxu0 0
    %1846 = vmatprep.mubr.bf16.mxu0 0
    %1847 = vmatmul.mubr.bf16.gmra.mrb[0].mxu0 %v1668
    %v1848 = vpop.f32.mrb[0].mxu0
    %v1849 = vadd.f32 %v1797, %v1848
    %v1850 = vpop.f32.mrb[0].mxu0
    %v1851 = vpop.f32.mrb[0].mxu0
    %v1852 = vpop.f32.mrb[0].mxu0
    %1853 = vdwg.mxu0
    %v1854 = vld [vmem:[%s6] sm:$0x1]
    %v1856 = vlaneseq
    %v1857 = vshrl.u32 %v1856, 7
    %v1858 = vsub.s32 0, %v1857
    %v1859 = vrot.slane %v1854, %v1858
    %v1861 = vadd.f32 %v1849, %v1859
    %v1862 = vtanh.pop %v1861
    %v1863 = vmul.f32 %v1862, 0.5
    %v1864 = vadd.f32 %v1863, 0.5
    %v1865 = vmul.f32 %v1864, %v1631
    %1867 = vrot.lane.b32.xlu0 %v1862, 64
    %v1868 = vpop.permute.xlu0 %1867
    %v1870 = vmul.f32 %v1864, %v1868
    %1872 = vrot.lane.b32.xlu0 %v1870, 32
    %v1873 = vpop.permute.xlu0 %1872
    %v1875 = vadd.f32 %v1865, %v1873
    %v1876 = vtanh.pop %v1875
    %1878 = vrot.lane.b32.xlu0 %v1876, 64
    %v1879 = vpop.permute.xlu0 %1878
    %v1881 = vmul.f32 %v1864, %v1879
    %v1882 = vpack.c.bf16 %v1881, %v1881
    %v1884 = vrot.slane %v1882, 2
    %1885 = vrot.lane.b32.xlu0 %v1884, 32
    %v1886 = vpop.permute.xlu0 %1885
    %vm1888 = vcmask 260102
    %1889 = vst.msk [vmem:[#allocation2] sm:$0x40] %vm1888, %v1886
    %v1890 = vpack.c.bf16 %v1736, %v1736
    %v1891 = vld [vmem:[%s4] sm:$0xf]
    %v1892 = vld [vmem:[%s4 + $0x4] sm:$0xf]
    %v1893 = vld [vmem:[%s4 + $0x8] sm:$0xf]
    %v1894 = vld [vmem:[%s4 + $0xc] sm:$0xf]
    %v1895 = vld [vmem:[%s5] sm:$0xf]
    %v1896 = vld [vmem:[%s5 + $0x4] sm:$0xf]
    %v1897 = vld [vmem:[%s5 + $0x8] sm:$0xf]
    %v1898 = vld [vmem:[%s5 + $0xc] sm:$0xf]
    %1899 = vrot.lane.b32.xlu0 %v1882, 32
    %v1900 = vpop.permute.xlu0 %1899
    %v1905 = vunpack.c.l.b16 %v1895
    %v1906 = vunpack.c.l.b16 %v1896
    %v1907 = vunpack.c.l.b16 %v1897
    %v1908 = vunpack.c.l.b16 %v1898
    %v1909 = vpack.c.b16 %v1906, %v1905
    %v1910 = vpack.c.b16 %v1908, %v1907
    %v1914 = vsel %vm134, %v1900, 0
    %1916 = vmatprep.subr.bf16.mxu0 0
    %1917 = vmatpush1.bf16.msra.mxu0 %v1909
    %1918 = vmatprep.subr.bf16.mxu0 0
    %1919 = vmatpush1.bf16.msra.mxu0 %v1910
    %1920 = vmatprep.subr.bf16.mxu0 0
    %1921 = vmatpush1.bf16.msra.mxu0 0
    %1922 = vmatprep.subr.bf16.mxu0 0
    %1923 = vmatpush1.bf16.msra.mxu0 0
    %1924 = vmatprep.subr.bf16.mxu0 0
    %1925 = vmatpush1.bf16.msra.mxu0 0
    %1926 = vmatprep.subr.bf16.mxu0 0
    %1927 = vmatpush1.bf16.msra.mxu0 0
    %1928 = vmatprep.subr.bf16.mxu0 0
    %1929 = vmatpush1.bf16.msra.mxu0 0
    %1930 = vmatprep.subr.bf16.mxu0 0
    %1931 = vmatpush1.bf16.msra.mxu0 0
    %1932 = vmatprep.subr.bf16.mxu0 0
    %1933 = vmatpush1.bf16.msra.mxu0 0
    %1934 = vmatprep.subr.bf16.mxu0 0
    %1935 = vmatpush1.bf16.msra.mxu0 0
    %1936 = vmatprep.subr.bf16.mxu0 0
    %1937 = vmatpush1.bf16.msra.mxu0 0
    %1938 = vmatprep.subr.bf16.mxu0 0
    %1939 = vmatpush1.bf16.msra.mxu0 0
    %1940 = vmatprep.subr.bf16.mxu0 0
    %1941 = vmatpush1.bf16.msra.mxu0 0
    %1942 = vmatprep.subr.bf16.mxu0 0
    %1943 = vmatpush1.bf16.msra.mxu0 0
    %1944 = vmatprep.subr.bf16.mxu0 0
    %1945 = vmatpush1.bf16.msra.mxu0 0
    %1946 = vmatprep.subr.bf16.mxu0 0
    %1947 = vmatpush1.bf16.msra.mxu0 0
    %1948 = vmatprep.mubr.bf16.mxu0 0
    %1949 = vmatmul.mubr.bf16.gmra.mrb[0].mxu0 %v1914
    %v1950 = vpop.f32.mrb[0].mxu0
    %v1951 = vadd.f32 0.0, %v1950
    %v1952 = vpop.f32.mrb[0].mxu0
    %v1953 = vpop.f32.mrb[0].mxu0
    %v1954 = vpop.f32.mrb[0].mxu0
    %1955 = vdwg.mxu0
    %v1957 = vrot.slane %v1890, 3
    %1958 = vrot.lane.b32.xlu0 %v1957, 32
    %v1959 = vpop.permute.xlu0 %1958
    %v1964 = vunpack.c.l.b16 %v1891
    %v1965 = vunpack.c.l.b16 %v1892
    %v1966 = vunpack.c.l.b16 %v1893
    %v1967 = vunpack.c.l.b16 %v1894
    %v1968 = vpack.c.b16 %v1965, %v1964
    %v1969 = vpack.c.b16 %v1967, %v1966
    %v1973 = vsel %vm134, %v1959, 0
    %1975 = vmatprep.subr.bf16.mxu0 0
    %1976 = vmatpush1.bf16.msra.mxu0 %v1968
    %1977 = vmatprep.subr.bf16.mxu0 0
    %1978 = vmatpush1.bf16.msra.mxu0 %v1969
    %1979 = vmatprep.subr.bf16.mxu0 0
    %1980 = vmatpush1.bf16.msra.mxu0 0
    %1981 = vmatprep.subr.bf16.mxu0 0
    %1982 = vmatpush1.bf16.msra.mxu0 0
    %1983 = vmatprep.subr.bf16.mxu0 0
    %1984 = vmatpush1.bf16.msra.mxu0 0
    %1985 = vmatprep.subr.bf16.mxu0 0
    %1986 = vmatpush1.bf16.msra.mxu0 0
    %1987 = vmatprep.subr.bf16.mxu0 0
    %1988 = vmatpush1.bf16.msra.mxu0 0
    %1989 = vmatprep.subr.bf16.mxu0 0
    %1990 = vmatpush1.bf16.msra.mxu0 0
    %1991 = vmatprep.subr.bf16.mxu0 0
    %1992 = vmatpush1.bf16.msra.mxu0 0
    %1993 = vmatprep.subr.bf16.mxu0 0
    %1994 = vmatpush1.bf16.msra.mxu0 0
    %1995 = vmatprep.subr.bf16.mxu0 0
    %1996 = vmatpush1.bf16.msra.mxu0 0
    %1997 = vmatprep.subr.bf16.mxu0 0
    %1998 = vmatpush1.bf16.msra.mxu0 0
    %1999 = vmatprep.subr.bf16.mxu0 0
    %2000 = vmatpush1.bf16.msra.mxu0 0
    %2001 = vmatprep.subr.bf16.mxu0 0
    %2002 = vmatpush1.bf16.msra.mxu0 0
    %2003 = vmatprep.subr.bf16.mxu0 0
    %2004 = vmatpush1.bf16.msra.mxu0 0
    %2005 = vmatprep.subr.bf16.mxu0 0
    %2006 = vmatpush1.bf16.msra.mxu0 0
    %2007 = vmatprep.mubr.bf16.mxu0 0
    %2008 = vmatmul.mubr.bf16.gmra.mrb[0].mxu0 %v1973
    %v2009 = vpop.f32.mrb[0].mxu0
    %v2010 = vadd.f32 %v1951, %v2009
    %v2011 = vpop.f32.mrb[0].mxu0
    %v2012 = vpop.f32.mrb[0].mxu0
    %v2013 = vpop.f32.mrb[0].mxu0
    %2014 = vdwg.mxu0
    %v2015 = vld [vmem:[%s6] sm:$0x1]
    %v2017 = vlaneseq
    %v2018 = vshrl.u32 %v2017, 7
    %v2019 = vsub.s32 0, %v2018
    %v2020 = vrot.slane %v2015, %v2019
    %v2022 = vadd.f32 %v2010, %v2020
    %v2023 = vtanh.pop %v2022
    %v2024 = vmul.f32 %v2023, 0.5
    %v2025 = vadd.f32 %v2024, 0.5
    %v2026 = vmul.f32 %v2025, %v1875
    %2028 = vrot.lane.b32.xlu0 %v2023, 64
    %v2029 = vpop.permute.xlu0 %2028
    %v2031 = vmul.f32 %v2025, %v2029
    %2033 = vrot.lane.b32.xlu0 %v2031, 32
    %v2034 = vpop.permute.xlu0 %2033
    %v2036 = vadd.f32 %v2026, %v2034
    %v2037 = vtanh.pop %v2036
    %2039 = vrot.lane.b32.xlu0 %v2037, 64
    %v2040 = vpop.permute.xlu0 %2039
    %v2042 = vmul.f32 %v2025, %v2040
    %v2043 = vpack.c.bf16 %v2042, %v2042
    %v2045 = vrot.slane %v2043, 1
    %2046 = vrot.lane.b32.xlu0 %v2045, 32
    %v2047 = vpop.permute.xlu0 %2046
    %vm2049 = vcmask 261127
    %2050 = vst.msk [vmem:[#allocation2] sm:$0x80] %vm2049, %v2047
    %2052 = vrot.lane.b32.xlu0 %v1736, 32
    %v2053 = vpop.permute.xlu0 %2052
    %vm2055 = vcmask 261126
    %2056 = vst.msk [vmem:[#allocation3 - $0x6] sm:$0xc0] %vm2055, %v2053
    %2058 = vrot.lane.b32.xlu0 %v1730, 96
    %v2059 = vpop.permute.xlu0 %2058
    %2061 = vst.msk [vmem:[#allocation5 - $0x6] sm:$0xc0] %vm2055, %v2059
    %2063 = vrot.lane.b32.xlu0 %v2042, 32
    %v2064 = vpop.permute.xlu0 %2063
    %s2066 = scalar_lea.vmem [#allocation3], 2
    %vm2067 = vcmask 254976
    %2068 = vst.msk [vmem:[%s2066] sm:$0x3] %vm2067, %v2064
    %2070 = vrot.lane.b32.xlu0 %v2036, 96
    %v2071 = vpop.permute.xlu0 %2070
    %s2073 = scalar_lea.vmem [#allocation5], 2
    %2074 = vst.msk [vmem:[%s2073] sm:$0x3] %vm2067, %v2071
    %v2075 = vld [vmem:[#allocation2] sm:$0xff]
    %v2076 = vld [vmem:[%s9] sm:$0xf]
    %v2077 = vld [vmem:[%s9 + $0x4] sm:$0xf]
    %v2078 = vld [vmem:[%s9 + $0x8] sm:$0xf]
    %v2079 = vld [vmem:[%s9 + $0xc] sm:$0xf]
    %v2080 = vld [vmem:[%s10] sm:$0x1]
    %v2082 = vlaneseq
    %v2083 = vshrl.u32 %v2082, 7
    %v2084 = vsub.s32 0, %v2083
    %v2085 = vrot.slane %v2080, %v2084
    %v2091 = vunpack.c.l.b16 %v2076
    %v2092 = vunpack.c.l.b16 %v2077
    %v2093 = vunpack.c.l.b16 %v2078
    %v2094 = vunpack.c.l.b16 %v2079
    %v2095 = vpack.c.b16 %v2092, %v2091
    %v2096 = vpack.c.b16 %v2094, %v2093
    %v2100 = vsel %vm134, %v2075, 0
    %2102 = vmatprep.subr.bf16.mxu0 0
    %2103 = vmatpush1.bf16.msra.mxu0 %v2095
    %2104 = vmatprep.subr.bf16.mxu0 0
    %2105 = vmatpush1.bf16.msra.mxu0 %v2096
    %2106 = vmatprep.subr.bf16.mxu0 0
    %2107 = vmatpush1.bf16.msra.mxu0 0
    %2108 = vmatprep.subr.bf16.mxu0 0
    %2109 = vmatpush1.bf16.msra.mxu0 0
    %2110 = vmatprep.subr.bf16.mxu0 0
    %2111 = vmatpush1.bf16.msra.mxu0 0
    %2112 = vmatprep.subr.bf16.mxu0 0
    %2113 = vmatpush1.bf16.msra.mxu0 0
    %2114 = vmatprep.subr.bf16.mxu0 0
    %2115 = vmatpush1.bf16.msra.mxu0 0
    %2116 = vmatprep.subr.bf16.mxu0 0
    %2117 = vmatpush1.bf16.msra.mxu0 0
    %2118 = vmatprep.subr.bf16.mxu0 0
    %2119 = vmatpush1.bf16.msra.mxu0 0
    %2120 = vmatprep.subr.bf16.mxu0 0
    %2121 = vmatpush1.bf16.msra.mxu0 0
    %2122 = vmatprep.subr.bf16.mxu0 0
    %2123 = vmatpush1.bf16.msra.mxu0 0
    %2124 = vmatprep.subr.bf16.mxu0 0
    %2125 = vmatpush1.bf16.msra.mxu0 0
    %2126 = vmatprep.subr.bf16.mxu0 0
    %2127 = vmatpush1.bf16.msra.mxu0 0
    %2128 = vmatprep.subr.bf16.mxu0 0
    %2129 = vmatpush1.bf16.msra.mxu0 0
    %2130 = vmatprep.subr.bf16.mxu0 0
    %2131 = vmatpush1.bf16.msra.mxu0 0
    %2132 = vmatprep.subr.bf16.mxu0 0
    %2133 = vmatpush1.bf16.msra.mxu0 0
    %2134 = vmatprep.mubr.bf16.mxu0 0
    %2135 = vmatmul.mubr.bf16.gmra.mrb[0].mxu0 %v2100
    %v2136 = vpop.f32.mrb[0].mxu0
    %v2137 = vadd.f32 %v2085, %v2136
    %v2138 = vpop.f32.mrb[0].mxu0
    %v2139 = vpop.f32.mrb[0].mxu0
    %v2140 = vadd.f32 %v2085, %v2139
    %v2141 = vpop.f32.mrb[0].mxu0
    %2142 = vdwg.mxu0
    %2143 = vst [vmem:[%s11] sm:$0xff] %v2137
    %2144 = vst [vmem:[%s11 + $0x8] sm:$0xff] %v2140
    // Predicated region
    $region46: #{lstm_forward.1} parent=1 // pred_check
      _
    $region47: #{lstm_forward.1} parent=1 // pred_check_branch
      %2146 = sbr.rel (0) target = $region49
    $region48: #{lstm_forward.1} parent=1 // pred_region
      _
    $region49: #{lstm_forward.1} parent=1 // pred_fallthru
      _
    // Predicated region
    $region50: #{lstm_forward.1} parent=1 // pred_check
      _
    $region51: #{lstm_forward.1} parent=1 // pred_check_branch
      %2148 = sbr.rel (0) target = $region53
    $region52: #{lstm_forward.1} parent=1 // pred_region
      %s2150 = ssub.s32 64, 64
      %2151 = vsyncadd [#allocation4], %s2150
      %s2152 = sshll.u32 [#allocation3], 4
      %s2153 = int_to_ptr.vmem [resolvable:$true] %s2152
      %2158 = dma.vmem_to_hbm [thread:$0]  %s2153, 64, %s12, [#allocation4], 32, 32, 2
    $region53: #{lstm_forward.1} parent=1 // pred_fallthru
      _
    // Predicated region
    $region54: #{lstm_forward.1} parent=1 // pred_check
      _
    $region55: #{lstm_forward.1} parent=1 // pred_check_branch
      %2160 = sbr.rel (0) target = $region57
    $region56: #{lstm_forward.1} parent=1 // pred_region
      %s2162 = ssub.s32 64, 64
      %2163 = vsyncadd [#allocation6], %s2162
      %s2164 = sshll.u32 [#allocation5], 4
      %s2165 = int_to_ptr.vmem [resolvable:$true] %s2164
      %2170 = dma.vmem_to_hbm [thread:$0]  %s2165, 64, %s13, [#allocation6], 32, 32, 2
    $region57: #{lstm_forward.1} parent=1 // pred_fallthru
      _
    // Predicated region
    $region58: #{lstm_forward.1} parent=1 // pred_check
      _
    $region59: #{lstm_forward.1} parent=1 // pred_check_branch
      %2172 = sbr.rel (0) target = $region61
    $region60: #{lstm_forward.1} parent=1 // pred_region
      _
    $region61: #{lstm_forward.1} parent=1 // pred_fallthru
      _
    // Predicated region
    $region62: #{lstm_forward.1} parent=1 // pred_check
      _
    $region63: #{lstm_forward.1} parent=1 // pred_check_branch
      %2174 = sbr.rel (0) target = $region65
    $region64: #{lstm_forward.1} parent=1 // pred_region
      %2175 = dma.done [#allocation4], 64
    $region65: #{lstm_forward.1} parent=1 // pred_fallthru
      _
    // Predicated region
    $region66: #{lstm_forward.1} parent=1 // pred_check
      _
    $region67: #{lstm_forward.1} parent=1 // pred_check_branch
      %2177 = sbr.rel (0) target = $region69
    $region68: #{lstm_forward.1} parent=1 // pred_region
      %2178 = dma.done [#allocation6], 64
    $region69: #{lstm_forward.1} parent=1 // pred_fallthru
      _
    %2179 = vsyncpa [#allocation4], 1
    %2180 = vsyncpa [#allocation6], 1

</llo_original>
